<compile_context>
chip_gen: v6e
topology: v6e:2x2x1
jax: 0.10.0
libtpu: 0.0.40
codegen_flags: <defaults>
</compile_context>

<pallas_src>
import jax
import jax.numpy as jnp
from jax import lax
from jax.experimental import pallas as pl
from jax.experimental.pallas import tpu as pltpu

HIDDEN_EDGE_DIM = 256
M_DIM = 16
INIT_EPS = 1e-3


def _silu(x):
    return x * jax.nn.sigmoid(x)


def _round_up(x, m):
    return ((x + m - 1) // m) * m


def _tpu_config():
    """Per-generation knobs: epilogue dtype, neighbour-chunk cap, VMEM limit."""
    try:
        kind = jax.devices()[0].device_kind.lower()
    except Exception:
        kind = ""
    is_v7 = ("v7" in kind) or ("7x" in kind)
    big_vmem = (("v5" in kind) or ("v6" in kind)) and not is_v7   # 128 MiB chips
    bf16_vpu = ("v6" in kind) or is_v7        # v5e has no bf16 VPU/EUP
    kc_cap = 64 if big_vmem else 32           # tighter chunks under 64 MiB VMEM
    vmem_limit = (96 if big_vmem else 48) * 1024 * 1024
    epi_dtype = jnp.bfloat16 if bf16_vpu else jnp.float32
    return epi_dtype, kc_cap, vmem_limit


def _choose_kc(k_pad, cap):
    """Largest multiple of 8 that divides k_pad and is <= cap (no padded-K waste)."""
    best, d = 8, 8
    while d <= min(k_pad, cap):
        if k_pad % d == 0:
            best = d
        d += 8
    return best


# ----------------------------------------------------------------------------
# Pallas kernel.  Grid = (batch, node_tile, k_chunk); the k axis is an
# "arbitrary" reduction axis with m_i accumulated in a VMEM scratch.
# ----------------------------------------------------------------------------
def egnn_kernel(feats_ref, fjd_ref, emsk_ref,
                w1i_ref, w1jd_ref, b1_ref,
                w2_ref, b2_ref,
                w3a_ref, w3b_ref, b3_ref,
                w4_ref, b4_ref,
                out_ref,
                nt_scr, macc_scr):
    k = pl.program_id(2)
    nk = pl.num_programs(2)

    KC = fjd_ref.shape[1]
    TN = fjd_ref.shape[2]
    Dp1 = fjd_ref.shape[3]
    H = w1i_ref.shape[1]
    M = w2_ref.shape[1]
    epi = nt_scr.dtype            # bf16 on v6e/v7x, f32 on v5e / unknown chips

    # ---- once per (batch, node tile): reset the m_i accumulator and compute
    #      the layer-1 self-feature term + bias (never replicated over K).
    @pl.when(k == 0)
    def _init():
        macc_scr[...] = jnp.zeros_like(macc_scr)
        fi0 = feats_ref[0]                                           # (TN, D)
        nt = jnp.dot(fi0.astype(jnp.bfloat16), w1i_ref[...],
                     preferred_element_type=jnp.float32) + b1_ref[...]
        nt_scr[...] = nt.astype(epi)

    # ---- edge MLP on this K-chunk (rel_dist rides as feature column D) -----
    fjd = fjd_ref[0].reshape(KC * TN, Dp1)                           # bf16
    ej = jnp.dot(fjd, w1jd_ref[...],
                 preferred_element_type=jnp.float32)                 # (KC*TN, H)
    h = _silu(ej.astype(epi).reshape(KC, TN, H) + nt_scr[...])       # (KC,TN,H)

    m_ij = jnp.dot(h.reshape(KC * TN, H).astype(jnp.bfloat16), w2_ref[...],
                   preferred_element_type=jnp.float32)               # (KC*TN, M)
    m_ij = _silu(m_ij.reshape(KC, TN, M) + b2_ref[...])              # f32

    # ---- mask + reduce this chunk's K axis, accumulate into scratch --------
    emsk = emsk_ref[0]                                               # (KC, TN, 1)
    macc_scr[...] += jnp.sum(m_ij * emsk, axis=0)                    # (TN, M) f32

    # ---- node MLP + residual, once per node tile, all f32 ------------------
    @pl.when(k == nk - 1)
    def _finalize():
        fi = feats_ref[0]                                            # (TN, D)
        h2 = _silu(jnp.dot(fi, w3a_ref[...], preferred_element_type=jnp.float32)
                   + jnp.dot(macc_scr[...], w3b_ref[...],
                             preferred_element_type=jnp.float32)
                   + b3_ref[...])                                    # (TN, 2D)
        out_ref[0] = (jnp.dot(h2, w4_ref[...], preferred_element_type=jnp.float32)
                      + b4_ref[...] + fi)                            # (TN, D)


def egnn_pallas(feats, fjd, emsk, weights, *, tile_n, tile_k, epi_dtype,
                vmem_limit):
    B, N_pad, D = feats.shape
    K_pad = fjd.shape[1]
    Dp1 = fjd.shape[3]
    TN, KC = tile_n, tile_k
    NT, KT = N_pad // TN, K_pad // KC
    H = weights[0].shape[1]          # w1i : (D, H)
    M = weights[3].shape[1]          # w2  : (H, M)

    def const_spec(a):
        nd = a.ndim
        return pl.BlockSpec(a.shape, lambda b, t, k, _nd=nd: (0,) * _nd)

    flops = 2 * B * N_pad * (K_pad * Dp1 * H       # neighbour+dist matmul
                             + D * H               # self-feature matmul
                             + K_pad * H * M       # edge MLP layer 2
                             + (D + M) * 2 * D     # node MLP layer 1
                             + 2 * D * D)          # node MLP layer 2
    transcendentals = B * N_pad * (K_pad * (H + M) + 2 * D)
    bytes_accessed = (feats.size * 4 + fjd.size * 2 + emsk.size * 2
                      + sum(int(w.size) * w.dtype.itemsize for w in weights)
                      + B * N_pad * D * 4)

    return pl.pallas_call(
        egnn_kernel,
        out_shape=jax.ShapeDtypeStruct((B, N_pad, D), jnp.float32),
        grid=(B, NT, KT),
        in_specs=[
            pl.BlockSpec((1, TN, D), lambda b, t, k: (b, t, 0)),         # feats
            pl.BlockSpec((1, KC, TN, Dp1), lambda b, t, k: (b, k, t, 0)),  # feats_j|dist
            pl.BlockSpec((1, KC, TN, 1), lambda b, t, k: (b, k, t, 0)),    # edge mask
        ] + [const_spec(w) for w in weights],
        out_specs=pl.BlockSpec((1, TN, D), lambda b, t, k: (b, t, 0)),
        scratch_shapes=[pltpu.VMEM((TN, H), epi_dtype),     # self term + b1
                        pltpu.VMEM((TN, M), jnp.float32)],  # m_i accumulator
        compiler_params=pltpu.CompilerParams(
            dimension_semantics=("parallel", "parallel", "arbitrary"),
            vmem_limit_bytes=int(vmem_limit)),
        cost_estimate=pl.CostEstimate(
            flops=int(flops), transcendentals=int(transcendentals),
            bytes_accessed=int(bytes_accessed)),
    )(feats, fjd, emsk, *weights)


# ----------------------------------------------------------------------------
# Glue (plain JAX): ranking, data-dependent top-k, gathers, k-major layout.
# ----------------------------------------------------------------------------
def _prepare(feats, coors, mask, adj_mat):
    B, N, D = feats.shape
    feats = feats.astype(jnp.float32)

    rel_coors = coors[:, :, None, :] - coors[:, None, :, :]          # (B,N,N,3)
    rel_dist = jnp.sum(rel_coors ** 2, axis=-1)                      # (B,N,N)

    rank_mask = mask[:, :, None] & mask[:, None, :]
    ranking = jnp.where(rank_mask, rel_dist, 1e5)

    # PyTorch computes num_nearest BEFORE removing the diagonal of adj_mat and
    # pulls it to the host with .item().
    # TODO(synk): host sync -> one compile per distinct K bucket; use a static
    # K_max + masking if the calling model allows.
    num_nearest = int(jnp.max(jnp.sum(adj_mat.astype(jnp.float32), axis=-1)))

    eye = jnp.eye(N, dtype=bool)[None]
    adj = jnp.where(eye, False, adj_mat)
    ranking = jnp.where(eye, -1.0, ranking)
    ranking = jnp.where(adj, 0.0, ranking)

    # topk(largest=False)  ==  top_k of negated values
    neg_top, nbhd_indices = lax.top_k(-ranking, num_nearest)         # (B,N,K)
    nbhd_mask = (-neg_top) <= 0.0                                    # valid_radius = 0

    K = num_nearest
    bidx = jnp.arange(B)[:, None, None]

    # k-major gathers: (B, K, N, ...) so the kernel's per-node-tile block is KC
    # contiguous (TN, D+1) slabs and the K reduction is a reduce over the
    # leading axis (no cross-lane work, no one-hot matmul).
    idx_km = jnp.transpose(nbhd_indices, (0, 2, 1))                  # (B,K,N)
    feats_j = feats[bidx, idx_km]                                    # (B,K,N,D)

    dist_g = jnp.take_along_axis(rel_dist, nbhd_indices, axis=2)     # (B,N,K)
    mask_j = mask[bidx, nbhd_indices]                                # (B,N,K)
    edge_mask = (mask[:, :, None] & mask_j) & nbhd_mask              # (B,N,K)
    dist_km = jnp.transpose(dist_g, (0, 2, 1))                       # (B,K,N)
    emsk_km = jnp.transpose(edge_mask, (0, 2, 1))                    # (B,K,N)

    # rel_dist rides with the neighbour features as one extra column, so the
    # layer-1 distance term is part of the MXU matmul (no lane-sparse stream).
    # NOTE: this puts rel_dist in bf16 like the other edge-MLP operands; with
    # real-scale checkpoints re-validate the bf16 choices (see review).
    fjd = jnp.concatenate([feats_j, dist_km[..., None]], axis=-1)    # (B,K,N,D+1)

    epi_dtype, kc_cap, vmem_limit = _tpu_config()

    TN = min(128, _round_up(N, 8))
    N_pad = _round_up(N, TN)
    K_pad = max(8, _round_up(K, 8))
    KC = _choose_kc(K_pad, kc_cap)

    feats_p = jnp.pad(feats, ((0, 0), (0, N_pad - N), (0, 0)))
    fjd = jnp.pad(fjd, ((0, 0), (0, K_pad - K), (0, N_pad - N), (0, 0)))
    emsk = jnp.pad(emsk_km, ((0, 0), (0, K_pad - K), (0, N_pad - N)))

    fjd = fjd.astype(jnp.bfloat16)
    emsk = emsk[..., None].astype(jnp.bfloat16)                      # (B,K,N,1)
    return feats_p, fjd, emsk, TN, KC, epi_dtype, vmem_limit


def egnn_forward(feats, coors, mask, adj_mat, params):
    B, N, D = feats.shape
    w1, b1, w2, b2, w3, b3, w4, b4 = params

    feats_p, fjd, emsk, TN, KC, epi, vmem_limit = _prepare(
        feats, coors, mask, adj_mat)

    # Split W1: rows [0:D] act on feats_i (computed once per node tile), rows
    # [D:2D+1] act on [feats_j, rel_dist] (the per-neighbour matmul).  Split W3
    # the same way for the node-MLP concat.  Edge-MLP MXU operands in bf16,
    # accumulation stays f32 in-kernel.
    w1i = w1[:D].astype(jnp.bfloat16)            # (D,   H) self-feature rows
    w1jd = w1[D:].astype(jnp.bfloat16)           # (D+1, H) neighbour + dist rows
    w3a = w3[:D]                                 # (D, 2D)
    w3b = w3[D:]                                 # (M, 2D)
    weights = (w1i, w1jd, b1,
               w2.astype(jnp.bfloat16), b2,
               w3a, w3b, b3, w4, b4)

    out_p = egnn_pallas(feats_p, fjd, emsk, weights,
                        tile_n=TN, tile_k=KC, epi_dtype=epi,
                        vmem_limit=vmem_limit)
    return out_p[:, :N, :], coors


# ----------------------------------------------------------------------------
# Pure-JAX f32 reference of the original module (for a correctness check).
# ----------------------------------------------------------------------------
def egnn_reference(feats, coors, mask, adj_mat, params):
    w1, b1, w2, b2, w3, b3, w4, b4 = params
    B, N, D = feats.shape
    feats = feats.astype(jnp.float32)

    rel_coors = coors[:, :, None, :] - coors[:, None, :, :]
    rel_dist = jnp.sum(rel_coors ** 2, axis=-1)                      # (B,N,N)
    rank_mask = mask[:, :, None] & mask[:, None, :]
    ranking = jnp.where(rank_mask, rel_dist, 1e5)
    num_nearest = int(jnp.max(jnp.sum(adj_mat.astype(jnp.float32), axis=-1)))
    eye = jnp.eye(N, dtype=bool)[None]
    adj = jnp.where(eye, False, adj_mat)
    ranking = jnp.where(eye, -1.0, ranking)
    ranking = jnp.where(adj, 0.0, ranking)
    neg_top, nbhd_indices = lax.top_k(-ranking, num_nearest)
    nbhd_mask = (-neg_top) <= 0.0

    bidx = jnp.arange(B)[:, None, None]
    rel_dist_g = jnp.take_along_axis(rel_dist, nbhd_indices, axis=2)[..., None]
    feats_j = feats[bidx, nbhd_indices]
    feats_i = jnp.broadcast_to(feats[:, :, None, :], feats_j.shape)
    edge_input = jnp.concatenate([feats_i, feats_j, rel_dist_g], axis=-1)

    h = _silu(edge_input @ w1 + b1)
    m_ij = _silu(h @ w2 + b2)
    mask_j = mask[bidx, nbhd_indices]
    emask = ((mask[:, :, None] & mask_j) & nbhd_mask)[..., None]
    m_ij = jnp.where(emask, m_ij, 0.0)
    m_i = jnp.sum(m_ij, axis=-2)

    node_in = jnp.concatenate([feats, m_i], axis=-1)
    node_out = _silu(node_in @ w3 + b3) @ w4 + b4 + feats
    return node_out, coors


# ----------------------------------------------------------------------------
# Deterministic parameter init (weights ~ N(0, init_eps), PyTorch-style biases)
# ----------------------------------------------------------------------------
def init_params(key, dim):
    edge_in = dim * 2 + 1
    ks = jax.random.split(key, 8)

    def lin(kw, kb, fan_in, fan_out):
        w = jax.random.normal(kw, (fan_in, fan_out), jnp.float32) * INIT_EPS
        bound = 1.0 / float(fan_in) ** 0.5
        b = jax.random.uniform(kb, (1, fan_out), jnp.float32, -bound, bound)
        return w, b

    w1, b1 = lin(ks[0], ks[1], edge_in, HIDDEN_EDGE_DIM)
    w2, b2 = lin(ks[2], ks[3], HIDDEN_EDGE_DIM, M_DIM)
    w3, b3 = lin(ks[4], ks[5], dim + M_DIM, 2 * dim)
    w4, b4 = lin(ks[6], ks[7], 2 * dim, dim)
    return (w1, b1, w2, b2, w3, b3, w4, b4)


if __name__ == "__main__":
    key = jax.random.PRNGKey(0)
    B, N, D = 2, 16, 32
    k1, k2, k3, k4, kp = jax.random.split(key, 5)

    feats = jax.random.normal(k1, (B, N, D), jnp.float32)
    coors = jax.random.normal(k2, (B, N, 3), jnp.float32)
    mask = jax.random.uniform(k3, (B, N)) > 0.1                    # bool (B, N)
    adj = jax.random.uniform(k4, (B, N, N)) > 0.7
    adj = adj | jnp.transpose(adj, (0, 2, 1))                      # symmetric bool

    params = init_params(kp, D)

    node_out, coors_out = egnn_forward(feats, coors, mask, adj, params)
    node_out = jax.block_until_ready(node_out)

    ref_out, _ = egnn_reference(feats, coors, mask, adj, params)
    assert node_out.shape == (B, N, D)
    assert jnp.allclose(node_out, ref_out, atol=2e-4, rtol=2e-4)

    print("KERNEL_OK")
</pallas_src>

<mosaic_0001>
module attributes {stable_mosaic.version = 11 : i64} {
  func.func @egnn_kernel(%arg0: i32, %arg1: i32, %arg2: i32, %arg3: memref<1x16x32xf32, #tpu.memory_space<vmem>>, %arg4: memref<1x16x16x33xbf16, #tpu.memory_space<vmem>>, %arg5: memref<1x16x16x1xbf16, #tpu.memory_space<vmem>>, %arg6: memref<32x256xbf16, #tpu.memory_space<vmem>>, %arg7: memref<33x256xbf16, #tpu.memory_space<vmem>>, %arg8: memref<1x256xf32, #tpu.memory_space<vmem>>, %arg9: memref<256x16xbf16, #tpu.memory_space<vmem>>, %arg10: memref<1x16xf32, #tpu.memory_space<vmem>>, %arg11: memref<32x64xf32, #tpu.memory_space<vmem>>, %arg12: memref<16x64xf32, #tpu.memory_space<vmem>>, %arg13: memref<1x64xf32, #tpu.memory_space<vmem>>, %arg14: memref<64x32xf32, #tpu.memory_space<vmem>>, %arg15: memref<1x32xf32, #tpu.memory_space<vmem>>, %arg16: memref<1x16x32xf32, #tpu.memory_space<vmem>>, %arg17: memref<16x256xf32, #tpu.memory_space<vmem>>, %arg18: memref<16x16xf32, #tpu.memory_space<vmem>>) attributes {dimension_semantics = [#tpu.dimension_semantics<parallel>, #tpu.dimension_semantics<parallel>, #tpu.dimension_semantics<arbitrary>], iteration_bounds = array<i64: 2, 1, 1>, scalar_prefetch = 0 : i64, scratch_operands = 2 : i64, tpu.core_type = #tpu.core_type<tc>, window_params = [{transform_indices = @transform_0, window_bounds = array<i64: 1, 16, 32>}, {transform_indices = @transform_1, window_bounds = array<i64: 1, 16, 16, 33>}, {transform_indices = @transform_2, window_bounds = array<i64: 1, 16, 16, 1>}, {pipeline_mode = #tpu.pipeline_mode<synchronous>, transform_indices = @transform_3, window_bounds = array<i64: 32, 256>}, {pipeline_mode = #tpu.pipeline_mode<synchronous>, transform_indices = @transform_4, window_bounds = array<i64: 33, 256>}, {pipeline_mode = #tpu.pipeline_mode<synchronous>, transform_indices = @transform_5, window_bounds = array<i64: 1, 256>}, {pipeline_mode = #tpu.pipeline_mode<synchronous>, transform_indices = @transform_6, window_bounds = array<i64: 256, 16>}, {pipeline_mode = #tpu.pipeline_mode<synchronous>, transform_indices = @transform_7, window_bounds = array<i64: 1, 16>}, {pipeline_mode = #tpu.pipeline_mode<synchronous>, transform_indices = @transform_8, window_bounds = array<i64: 32, 64>}, {pipeline_mode = #tpu.pipeline_mode<synchronous>, transform_indices = @transform_9, window_bounds = array<i64: 16, 64>}, {pipeline_mode = #tpu.pipeline_mode<synchronous>, transform_indices = @transform_10, window_bounds = array<i64: 1, 64>}, {pipeline_mode = #tpu.pipeline_mode<synchronous>, transform_indices = @transform_11, window_bounds = array<i64: 64, 32>}, {pipeline_mode = #tpu.pipeline_mode<synchronous>, transform_indices = @transform_12, window_bounds = array<i64: 1, 32>}, {transform_indices = @transform_13, window_bounds = array<i64: 1, 16, 32>}]} {
    %c0_i32 = arith.constant 0 : i32
    %0 = arith.cmpi eq, %arg2, %c0_i32 : i32
    %1 = arith.extui %0 : i1 to i32
    %c0_i32_0 = arith.constant 0 : i32
    %2 = arith.cmpi ne, %1, %c0_i32_0 : i32
    scf.if %2 {
      %cst_26 = arith.constant 0.000000e+00 : f32
      %46 = vector.broadcast %cst_26 : f32 to vector<16x16xf32>
      %c0_27 = arith.constant 0 : index
      %c0_28 = arith.constant 0 : index
      %47 = vector.load %arg18[%c0_27, %c0_28] : memref<16x16xf32, #tpu.memory_space<vmem>>, vector<16x16xf32>
      tpu.vector_store %arg18[%c0_27, %c0_28], %46 {strides = array<i32>} : memref<16x16xf32, #tpu.memory_space<vmem>>, vector<16x16xf32>,
      %c0_29 = arith.constant 0 : index
      %c0_30 = arith.constant 0 : index
      %c0_31 = arith.constant 0 : index
      %48 = vector.load %arg3[%c0_29, %c0_30, %c0_31] : memref<1x16x32xf32, #tpu.memory_space<vmem>>, vector<1x16x32xf32>
      %49 = vector.shape_cast %48 : vector<1x16x32xf32> to vector<16x32xf32>
      %50 = arith.truncf %49 : vector<16x32xf32> to vector<16x32xbf16>
      %c0_32 = arith.constant 0 : index
      %c0_33 = arith.constant 0 : index
      %51 = vector.load %arg6[%c0_32, %c0_33] : memref<32x256xbf16, #tpu.memory_space<vmem>>, vector<32x256xbf16>
      %cst_34 = arith.constant dense<0.000000e+00> : vector<16x256xf32>
      %52 = tpu.matmul %50, %51, %cst_34 {dimension_numbers = #tpu.dot_dimension_numbers<[1], [0], [0], [1], [0, 0, 1, 1], [], []>} : vector<16x32xbf16>, vector<32x256xbf16>, vector<16x256xf32> -> vector<16x256xf32>
      %c0_35 = arith.constant 0 : index
      %c0_36 = arith.constant 0 : index
      %53 = vector.load %arg8[%c0_35, %c0_36] : memref<1x256xf32, #tpu.memory_space<vmem>>, vector<1x256xf32>
      %54 = vector.broadcast %53 : vector<1x256xf32> to vector<16x256xf32>
      %55 = arith.addf %52, %54 : vector<16x256xf32>
      %c0_37 = arith.constant 0 : index
      %c0_38 = arith.constant 0 : index
      %56 = vector.load %arg17[%c0_37, %c0_38] : memref<16x256xf32, #tpu.memory_space<vmem>>, vector<16x256xf32>
      tpu.vector_store %arg17[%c0_37, %c0_38], %55 {strides = array<i32>} : memref<16x256xf32, #tpu.memory_space<vmem>>, vector<16x256xf32>,
    } else {
    }
    %c0 = arith.constant 0 : index
    %c0_1 = arith.constant 0 : index
    %c0_2 = arith.constant 0 : index
    %c0_3 = arith.constant 0 : index
    %3 = vector.load %arg4[%c0, %c0_1, %c0_2, %c0_3] : memref<1x16x16x33xbf16, #tpu.memory_space<vmem>>, vector<1x16x16x33xbf16>
    %4 = vector.shape_cast %3 : vector<1x16x16x33xbf16> to vector<16x16x33xbf16>
    %5 = vector.shape_cast %4 : vector<16x16x33xbf16> to vector<256x33xbf16>
    %c0_4 = arith.constant 0 : index
    %c0_5 = arith.constant 0 : index
    %6 = vector.load %arg7[%c0_4, %c0_5] : memref<33x256xbf16, #tpu.memory_space<vmem>>, vector<33x256xbf16>
    %cst = arith.constant dense<0.000000e+00> : vector<256x256xf32>
    %7 = tpu.matmul %5, %6, %cst {dimension_numbers = #tpu.dot_dimension_numbers<[1], [0], [0], [1], [0, 0, 1, 1], [], []>} : vector<256x33xbf16>, vector<33x256xbf16>, vector<256x256xf32> -> vector<256x256xf32>
    %8 = vector.shape_cast %7 : vector<256x256xf32> to vector<16x16x256xf32>
    %c0_6 = arith.constant 0 : index
    %c0_7 = arith.constant 0 : index
    %9 = vector.load %arg17[%c0_6, %c0_7] : memref<16x256xf32, #tpu.memory_space<vmem>>, vector<16x256xf32>
    %10 = vector.shape_cast %9 : vector<16x256xf32> to vector<1x16x256xf32>
    %11 = vector.broadcast %10 : vector<1x16x256xf32> to vector<16x16x256xf32>
    %12 = arith.addf %8, %11 : vector<16x16x256xf32>
    %13 = arith.negf %12 : vector<16x16x256xf32>
    %14 = math.exp %13 : vector<16x16x256xf32>
    %cst_8 = arith.constant 1.000000e+00 : f32
    %15 = vector.broadcast %cst_8 : f32 to vector<16x16x256xf32>
    %16 = arith.addf %15, %14 : vector<16x16x256xf32>
    %17 = arith.divf %15, %16 : vector<16x16x256xf32>
    %18 = arith.mulf %12, %17 : vector<16x16x256xf32>
    %19 = vector.shape_cast %18 : vector<16x16x256xf32> to vector<256x256xf32>
    %20 = arith.truncf %19 : vector<256x256xf32> to vector<256x256xbf16>
    %c0_9 = arith.constant 0 : index
    %c0_10 = arith.constant 0 : index
    %21 = vector.load %arg9[%c0_9, %c0_10] : memref<256x16xbf16, #tpu.memory_space<vmem>>, vector<256x16xbf16>
    %cst_11 = arith.constant dense<0.000000e+00> : vector<256x16xf32>
    %22 = tpu.matmul %20, %21, %cst_11 {dimension_numbers = #tpu.dot_dimension_numbers<[1], [0], [0], [1], [0, 0, 1, 1], [], []>} : vector<256x256xbf16>, vector<256x16xbf16>, vector<256x16xf32> -> vector<256x16xf32>
    %23 = vector.shape_cast %22 : vector<256x16xf32> to vector<16x16x16xf32>
    %c0_12 = arith.constant 0 : index
    %c0_13 = arith.constant 0 : index
    %24 = vector.load %arg10[%c0_12, %c0_13] : memref<1x16xf32, #tpu.memory_space<vmem>>, vector<1x16xf32>
    %25 = vector.shape_cast %24 : vector<1x16xf32> to vector<1x1x16xf32>
    %26 = vector.broadcast %25 : vector<1x1x16xf32> to vector<16x16x16xf32>
    %27 = arith.addf %23, %26 : vector<16x16x16xf32>
    %28 = arith.negf %27 : vector<16x16x16xf32>
    %29 = math.exp %28 : vector<16x16x16xf32>
    %cst_14 = arith.constant 1.000000e+00 : f32
    %30 = vector.broadcast %cst_14 : f32 to vector<16x16x16xf32>
    %31 = arith.addf %30, %29 : vector<16x16x16xf32>
    %32 = arith.divf %30, %31 : vector<16x16x16xf32>
    %33 = arith.mulf %27, %32 : vector<16x16x16xf32>
    %c0_15 = arith.constant 0 : index
    %c0_16 = arith.constant 0 : index
    %c0_17 = arith.constant 0 : index
    %c0_18 = arith.constant 0 : index
    %34 = vector.load %arg5[%c0_15, %c0_16, %c0_17, %c0_18] : memref<1x16x16x1xbf16, #tpu.memory_space<vmem>>, vector<1x16x16x1xbf16>
    %35 = vector.shape_cast %34 : vector<1x16x16x1xbf16> to vector<16x16x1xbf16>
    %c0_19 = arith.constant 0 : index
    %c0_20 = arith.constant 0 : index
    %36 = vector.load %arg18[%c0_19, %c0_20] : memref<16x16xf32, #tpu.memory_space<vmem>>, vector<16x16xf32>
    %37 = arith.extf %35 : vector<16x16x1xbf16> to vector<16x16x1xf32>
    %38 = vector.broadcast %37 : vector<16x16x1xf32> to vector<16x16x16xf32>
    %39 = arith.mulf %33, %38 : vector<16x16x16xf32>
    %cst_21 = arith.constant dense<0.000000e+00> : vector<16x16xf32>
    %40 = vector.multi_reduction <add>, %39, %cst_21 [0] : vector<16x16x16xf32> to vector<16x16xf32>
    %41 = arith.addf %36, %40 : vector<16x16xf32>
    %c0_22 = arith.constant 0 : index
    %c0_23 = arith.constant 0 : index
    %42 = vector.load %arg18[%c0_22, %c0_23] : memref<16x16xf32, #tpu.memory_space<vmem>>, vector<16x16xf32>
    tpu.vector_store %arg18[%c0_22, %c0_23], %41 {strides = array<i32>} : memref<16x16xf32, #tpu.memory_space<vmem>>, vector<16x16xf32>,
    %c0_i32_24 = arith.constant 0 : i32
    %43 = arith.cmpi eq, %arg2, %c0_i32_24 : i32
    %44 = arith.extui %43 : i1 to i32
    %c0_i32_25 = arith.constant 0 : i32
    %45 = arith.cmpi ne, %44, %c0_i32_25 : i32
    scf.if %45 {
      %c0_26 = arith.constant 0 : index
      %c0_27 = arith.constant 0 : index
      %c0_28 = arith.constant 0 : index
      %46 = vector.load %arg3[%c0_26, %c0_27, %c0_28] : memref<1x16x32xf32, #tpu.memory_space<vmem>>, vector<1x16x32xf32>
      %47 = vector.shape_cast %46 : vector<1x16x32xf32> to vector<16x32xf32>
      %c0_29 = arith.constant 0 : index
      %c0_30 = arith.constant 0 : index
      %48 = vector.load %arg11[%c0_29, %c0_30] : memref<32x64xf32, #tpu.memory_space<vmem>>, vector<32x64xf32>
      %cst_31 = arith.constant dense<0.000000e+00> : vector<16x64xf32>
      %49 = tpu.matmul %47, %48, %cst_31 {dimension_numbers = #tpu.dot_dimension_numbers<[1], [0], [0], [1], [0, 0, 1, 1], [], []>} : vector<16x32xf32>, vector<32x64xf32>, vector<16x64xf32> -> vector<16x64xf32>
      %c0_32 = arith.constant 0 : index
      %c0_33 = arith.constant 0 : index
      %50 = vector.load %arg18[%c0_32, %c0_33] : memref<16x16xf32, #tpu.memory_space<vmem>>, vector<16x16xf32>
      %c0_34 = arith.constant 0 : index
      %c0_35 = arith.constant 0 : index
      %51 = vector.load %arg12[%c0_34, %c0_35] : memref<16x64xf32, #tpu.memory_space<vmem>>, vector<16x64xf32>
      %cst_36 = arith.constant dense<0.000000e+00> : vector<16x64xf32>
      %52 = tpu.matmul %50, %51, %cst_36 {dimension_numbers = #tpu.dot_dimension_numbers<[1], [0], [0], [1], [0, 0, 1, 1], [], []>} : vector<16x16xf32>, vector<16x64xf32>, vector<16x64xf32> -> vector<16x64xf32>
      %53 = arith.addf %49, %52 : vector<16x64xf32>
      %c0_37 = arith.constant 0 : index
      %c0_38 = arith.constant 0 : index
      %54 = vector.load %arg13[%c0_37, %c0_38] : memref<1x64xf32, #tpu.memory_space<vmem>>, vector<1x64xf32>
      %55 = vector.broadcast %54 : vector<1x64xf32> to vector<16x64xf32>
      %56 = arith.addf %53, %55 : vector<16x64xf32>
      %57 = arith.negf %56 : vector<16x64xf32>
      %58 = math.exp %57 : vector<16x64xf32>
      %cst_39 = arith.constant 1.000000e+00 : f32
      %59 = vector.broadcast %cst_39 : f32 to vector<16x64xf32>
      %60 = arith.addf %59, %58 : vector<16x64xf32>
      %61 = arith.divf %59, %60 : vector<16x64xf32>
      %62 = arith.mulf %56, %61 : vector<16x64xf32>
      %c0_40 = arith.constant 0 : index
      %c0_41 = arith.constant 0 : index
      %63 = vector.load %arg14[%c0_40, %c0_41] : memref<64x32xf32, #tpu.memory_space<vmem>>, vector<64x32xf32>
      %cst_42 = arith.constant dense<0.000000e+00> : vector<16x32xf32>
      %64 = tpu.matmul %62, %63, %cst_42 {dimension_numbers = #tpu.dot_dimension_numbers<[1], [0], [0], [1], [0, 0, 1, 1], [], []>} : vector<16x64xf32>, vector<64x32xf32>, vector<16x32xf32> -> vector<16x32xf32>
      %c0_43 = arith.constant 0 : index
      %c0_44 = arith.constant 0 : index
      %65 = vector.load %arg15[%c0_43, %c0_44] : memref<1x32xf32, #tpu.memory_space<vmem>>, vector<1x32xf32>
      %66 = vector.broadcast %65 : vector<1x32xf32> to vector<16x32xf32>
      %67 = arith.addf %64, %66 : vector<16x32xf32>
      %68 = arith.addf %67, %47 : vector<16x32xf32>
      %c0_45 = arith.constant 0 : index
      %c0_46 = arith.constant 0 : index
      %c0_47 = arith.constant 0 : index
      %69 = vector.load %arg16[%c0_45, %c0_46, %c0_47] : memref<1x16x32xf32, #tpu.memory_space<vmem>>, vector<1x16x32xf32>
      %70 = vector.shape_cast %69 : vector<1x16x32xf32> to vector<16x32xf32>
      %71 = vector.shape_cast %68 : vector<16x32xf32> to vector<1x16x32xf32>
      tpu.vector_store %arg16[%c0_45, %c0_46, %c0_47], %71 {strides = array<i32>} : memref<1x16x32xf32, #tpu.memory_space<vmem>>, vector<1x16x32xf32>,
    } else {
    }
    return
  }
  func.func @transform_0(%arg0: i32, %arg1: i32, %arg2: i32) -> (i32, i32, i32) {
    %c0_i32 = arith.constant 0 : i32
    %c0_i32_0 = arith.constant 0 : i32
    return %arg0, %arg1, %c0_i32 : i32, i32, i32
  }
  func.func @transform_1(%arg0: i32, %arg1: i32, %arg2: i32) -> (i32, i32, i32, i32) {
    %c0_i32 = arith.constant 0 : i32
    %c0_i32_0 = arith.constant 0 : i32
    return %arg0, %arg2, %arg1, %c0_i32 : i32, i32, i32, i32
  }
  func.func @transform_2(%arg0: i32, %arg1: i32, %arg2: i32) -> (i32, i32, i32, i32) {
    %c0_i32 = arith.constant 0 : i32
    %c0_i32_0 = arith.constant 0 : i32
    return %arg0, %arg2, %arg1, %c0_i32 : i32, i32, i32, i32
  }
  func.func @transform_3(%arg0: i32, %arg1: i32, %arg2: i32) -> (i32, i32) {
    %c0_i32 = arith.constant 0 : i32
    %c0_i32_0 = arith.constant 0 : i32
    %c0_i32_1 = arith.constant 0 : i32
    return %c0_i32, %c0_i32_0 : i32, i32
  }
  func.func @transform_4(%arg0: i32, %arg1: i32, %arg2: i32) -> (i32, i32) {
    %c0_i32 = arith.constant 0 : i32
    %c0_i32_0 = arith.constant 0 : i32
    %c0_i32_1 = arith.constant 0 : i32
    return %c0_i32, %c0_i32_0 : i32, i32
  }
  func.func @transform_5(%arg0: i32, %arg1: i32, %arg2: i32) -> (i32, i32) {
    %c0_i32 = arith.constant 0 : i32
    %c0_i32_0 = arith.constant 0 : i32
    %c0_i32_1 = arith.constant 0 : i32
    return %c0_i32, %c0_i32_0 : i32, i32
  }
  func.func @transform_6(%arg0: i32, %arg1: i32, %arg2: i32) -> (i32, i32) {
    %c0_i32 = arith.constant 0 : i32
    %c0_i32_0 = arith.constant 0 : i32
    %c0_i32_1 = arith.constant 0 : i32
    return %c0_i32, %c0_i32_0 : i32, i32
  }
  func.func @transform_7(%arg0: i32, %arg1: i32, %arg2: i32) -> (i32, i32) {
    %c0_i32 = arith.constant 0 : i32
    %c0_i32_0 = arith.constant 0 : i32
    %c0_i32_1 = arith.constant 0 : i32
    return %c0_i32, %c0_i32_0 : i32, i32
  }
  func.func @transform_8(%arg0: i32, %arg1: i32, %arg2: i32) -> (i32, i32) {
    %c0_i32 = arith.constant 0 : i32
    %c0_i32_0 = arith.constant 0 : i32
    %c0_i32_1 = arith.constant 0 : i32
    return %c0_i32, %c0_i32_0 : i32, i32
  }
  func.func @transform_9(%arg0: i32, %arg1: i32, %arg2: i32) -> (i32, i32) {
    %c0_i32 = arith.constant 0 : i32
    %c0_i32_0 = arith.constant 0 : i32
    %c0_i32_1 = arith.constant 0 : i32
    return %c0_i32, %c0_i32_0 : i32, i32
  }
  func.func @transform_10(%arg0: i32, %arg1: i32, %arg2: i32) -> (i32, i32) {
    %c0_i32 = arith.constant 0 : i32
    %c0_i32_0 = arith.constant 0 : i32
    %c0_i32_1 = arith.constant 0 : i32
    return %c0_i32, %c0_i32_0 : i32, i32
  }
  func.func @transform_11(%arg0: i32, %arg1: i32, %arg2: i32) -> (i32, i32) {
    %c0_i32 = arith.constant 0 : i32
    %c0_i32_0 = arith.constant 0 : i32
    %c0_i32_1 = arith.constant 0 : i32
    return %c0_i32, %c0_i32_0 : i32, i32
  }
  func.func @transform_12(%arg0: i32, %arg1: i32, %arg2: i32) -> (i32, i32) {
    %c0_i32 = arith.constant 0 : i32
    %c0_i32_0 = arith.constant 0 : i32
    %c0_i32_1 = arith.constant 0 : i32
    return %c0_i32, %c0_i32_0 : i32, i32
  }
  func.func @transform_13(%arg0: i32, %arg1: i32, %arg2: i32) -> (i32, i32, i32) {
    %c0_i32 = arith.constant 0 : i32
    %c0_i32_0 = arith.constant 0 : i32
    return %arg0, %arg1, %c0_i32 : i32, i32, i32
  }
}

</mosaic_0001>

<llo_original>
// kernel: tpu_custom_call.1
$region0: #{tpu_custom_call.1}
  #allocation0 [shape = 'u32[]', space=smem, size = 0x4, offset = 0x4, fixed_abs, tag = 'smem constant byte address 0x4 - core index']
  #allocation1 [shape = 'u32[144,128]{1,0:T(1,128)}', space=vmem, size = 0x12000, scoped, tag = 'internal scratch']
  #allocation2 [shape = 'f32[16,256]{1,0:T(8,128)}', space=vmem, size = 0x4000, scoped, tag = 'scratch operand']
  #allocation3 [shape = 'f32[16,16]{1,0:T(8,128)}', space=vmem, size = 0x2000, scoped, tag = 'scratch operand']
  %s0 = inlined_call_operand.vmem [shape: f32[2,16,32], index: 0, kind: input, shape index: {}]
  %s1 = inlined_call_operand.vmem [shape: bf16[2,16,16,33], index: 1, kind: input, shape index: {}]
  %s2 = inlined_call_operand.vmem [shape: bf16[2,16,16,1], index: 2, kind: input, shape index: {}]
  %s3 = inlined_call_operand.vmem [shape: bf16[32,256], index: 3, kind: input, shape index: {}]
  %s4 = inlined_call_operand.vmem [shape: bf16[33,256], index: 4, kind: input, shape index: {}]
  %s5 = inlined_call_operand.vmem [shape: f32[1,256], index: 5, kind: input, shape index: {}]
  %s6 = inlined_call_operand.vmem [shape: bf16[256,16], index: 6, kind: input, shape index: {}]
  %s7 = inlined_call_operand.vmem [shape: f32[1,16], index: 7, kind: input, shape index: {}]
  %s8 = inlined_call_operand.vmem [shape: f32[32,64], index: 8, kind: input, shape index: {}]
  %s9 = inlined_call_operand.vmem [shape: f32[16,64], index: 9, kind: input, shape index: {}]
  %s10 = inlined_call_operand.vmem [shape: f32[1,64], index: 10, kind: input, shape index: {}]
  %s11 = inlined_call_operand.vmem [shape: f32[64,32], index: 11, kind: input, shape index: {}]
  %s12 = inlined_call_operand.vmem [shape: f32[1,32], index: 12, kind: input, shape index: {}]
  %s13 = inlined_call_operand.hbm [shape: f32[2,16,32], index: 13, kind: output, shape index: {}]
  %s14 = sld [smem:[#allocation0]]
  $region93: #{tpu_custom_call.1} parent=0
    _
  %s16 = ssub.s32 1, %s14
  %s17 = scalar_select 0, %s16, %s14
  $region1: #{tpu_custom_call.1} parent=0
    #allocation4 [shape = 'u8[16384]{0}', space=vmem, size = 0x4000, scoped, tag = 'output window, operand 0']
    #allocation5 [shape = 's32[2]{0}', space=sflag, size = 0x8, scoped, tag = 'scoped memory for tpu_custom_call.1']
    %18 = vsyncpa [#allocation5], 0
    %s19 = scalar_lea.sflag [#allocation5], 1
    %20 = vsyncpa %s19, 0
    loop: start=0, step=1, limit=4
    $region2: #{tpu_custom_call.1} parent=1 // loop_pre_header
      _
    $region3: #{tpu_custom_call.1} parent=1 // loop_header
      %s22 = sphi 0, %s26
      %p23 = scmp.ge.s32.totalorder %s22, 4
      %s29 = sphi 0, %s48
      %s30 = sphi 0, %s44
      %s31 = sphi 0, %s40
      %s32 = sphi 0, %s29
      %s33 = sphi 0, %s30
      %s34 = sphi 0, %s31
      %s35 = sphi 0, %s32
      %s36 = sphi 0, %s33
      %s37 = sphi 0, %s34
      %s53 = sphi 0, %s55
      %s56 = sphi 0, %s53
      %s57 = sphi 0, %s56
      %s73 = sphi 0, %s57
      %s83 = sphi 0, %s85
      %s86 = sphi 0, %s83
      %s87 = sphi 0, %s86
      %s103 = sphi 0, %s87
      %s113 = sphi 0, %s115
      %s116 = sphi 0, %s113
      %s117 = sphi 0, %s116
      %s133 = sphi 0, %s117
      %s137 = sphi 0, %s137
      %s139 = sphi 0, %s137
      %s140 = sphi 0, %s139
      %s154 = sphi 0, %s140
      %s158 = sphi 0, %s158
      %s160 = sphi 0, %s158
      %s161 = sphi 0, %s160
      %s175 = sphi 0, %s161
      %s179 = sphi 0, %s179
      %s181 = sphi 0, %s179
      %s182 = sphi 0, %s181
      %s196 = sphi 0, %s182
      %s200 = sphi 0, %s200
      %s202 = sphi 0, %s200
      %s203 = sphi 0, %s202
      %s217 = sphi 0, %s203
      %s221 = sphi 0, %s221
      %s223 = sphi 0, %s221
      %s224 = sphi 0, %s223
      %s238 = sphi 0, %s224
      %s242 = sphi 0, %s242
      %s244 = sphi 0, %s242
      %s245 = sphi 0, %s244
      %s259 = sphi 0, %s245
      %s263 = sphi 0, %s263
      %s265 = sphi 0, %s263
      %s266 = sphi 0, %s265
      %s280 = sphi 0, %s266
      %s284 = sphi 0, %s284
      %s286 = sphi 0, %s284
      %s287 = sphi 0, %s286
      %s301 = sphi 0, %s287
      %s305 = sphi 0, %s305
      %s307 = sphi 0, %s305
      %s308 = sphi 0, %s307
      %s322 = sphi 0, %s308
      %s326 = sphi 0, %s326
      %s328 = sphi 0, %s326
      %s329 = sphi 0, %s328
      %s343 = sphi 0, %s329
      %s351 = sphi 0, %s353
      %s354 = sphi 0, %s351
      %s355 = sphi 0, %s354
      %s371 = sphi 0, %s355
    $region4: #{tpu_custom_call.1} parent=1 // loop_header_branch
      %25 = sbr.rel (%p23) target = $region8
    $region5: #{tpu_custom_call.1} parent=1 // loop_body
      %s27 = ssub.s32 %s22, 1
      %s28 = ssub.s32 %s22, 2
      %s38 = sadd.s32 1, %s31
      %p39 = scmp.ge.s32.totalorder %s38, 1
      %s40 = scalar_select %p39, 0, %s38
      %s41 = sadd.s32 1, %s30
      %s42 = scalar_select %p39, %s41, %s30
      %p43 = scmp.ge.s32.totalorder %s42, 1
      %s44 = scalar_select %p43, 0, %s42
      %s45 = sadd.s32 1, %s29
      %s46 = scalar_select %p43, %s45, %s29
      %p47 = scmp.ge.s32.totalorder %s46, 2
      %s48 = scalar_select %p47, 0, %s46
      %s49 = ssub.s32 %s29, %s48
      %s50 = ssub.s32 %s30, %s44
      %s51 = sor.u32 %s49, %s50
      %p52 = scmp.eq.s32.totalorder %s51, 0
      %s54 = sadd.s32 %s53, 1
      %s55 = scalar_select %p52, %s53, %s54
      %p58 = pneg %p52
      %p59 = scmp.eq.s32.totalorder %s22, 1
      %p60 = por %p58, %p59
      %p61 = scmp.ne.s32.totalorder %s53, %s56
      %p62 = scmp.eq.s32.totalorder %s22, 0
      %p63 = por %p61, %p62
      %p64 = scmp.ne.s32.totalorder %s53, %s56
      %p65 = scmp.eq.s32.totalorder %s27, 1
      %p66 = por %p64, %p65
      %p67 = scmp.ne.s32.totalorder %s56, %s57
      %p68 = scmp.eq.s32.totalorder %s27, 0
      %p69 = por %p67, %p68
      %p70 = scmp.ne.s32.totalorder %s56, %s57
      %p71 = scmp.eq.s32.totalorder %s28, 1
      %p72 = por %p70, %p71
      %p74 = scmp.ne.s32.totalorder %s57, %s73
      %p75 = scmp.eq.s32.totalorder %s28, 0
      %p76 = por %p74, %p75
      %s77 = ssub.s32 %s29, %s48
      %s78 = ssub.s32 %s31, %s40
      %s79 = sor.u32 %s77, %s78
      %s80 = ssub.s32 %s30, %s44
      %s81 = sor.u32 %s79, %s80
      %p82 = scmp.eq.s32.totalorder %s81, 0
      %s84 = sadd.s32 %s83, 1
      %s85 = scalar_select %p82, %s83, %s84
      %p88 = pneg %p82
      %p89 = scmp.eq.s32.totalorder %s22, 1
      %p90 = por %p88, %p89
      %p91 = scmp.ne.s32.totalorder %s83, %s86
      %p92 = scmp.eq.s32.totalorder %s22, 0
      %p93 = por %p91, %p92
      %p94 = scmp.ne.s32.totalorder %s83, %s86
      %p95 = scmp.eq.s32.totalorder %s27, 1
      %p96 = por %p94, %p95
      %p97 = scmp.ne.s32.totalorder %s86, %s87
      %p98 = scmp.eq.s32.totalorder %s27, 0
      %p99 = por %p97, %p98
      %p100 = scmp.ne.s32.totalorder %s86, %s87
      %p101 = scmp.eq.s32.totalorder %s28, 1
      %p102 = por %p100, %p101
      %p104 = scmp.ne.s32.totalorder %s87, %s103
      %p105 = scmp.eq.s32.totalorder %s28, 0
      %p106 = por %p104, %p105
      %s107 = ssub.s32 %s29, %s48
      %s108 = ssub.s32 %s31, %s40
      %s109 = sor.u32 %s107, %s108
      %s110 = ssub.s32 %s30, %s44
      %s111 = sor.u32 %s109, %s110
      %p112 = scmp.eq.s32.totalorder %s111, 0
      %s114 = sadd.s32 %s113, 1
      %s115 = scalar_select %p112, %s113, %s114
      %p118 = pneg %p112
      %p119 = scmp.eq.s32.totalorder %s22, 1
      %p120 = por %p118, %p119
      %p121 = scmp.ne.s32.totalorder %s113, %s116
      %p122 = scmp.eq.s32.totalorder %s22, 0
      %p123 = por %p121, %p122
      %p124 = scmp.ne.s32.totalorder %s113, %s116
      %p125 = scmp.eq.s32.totalorder %s27, 1
      %p126 = por %p124, %p125
      %p127 = scmp.ne.s32.totalorder %s116, %s117
      %p128 = scmp.eq.s32.totalorder %s27, 0
      %p129 = por %p127, %p128
      %p130 = scmp.ne.s32.totalorder %s116, %s117
      %p131 = scmp.eq.s32.totalorder %s28, 1
      %p132 = por %p130, %p131
      %p134 = scmp.ne.s32.totalorder %s117, %s133
      %p135 = scmp.eq.s32.totalorder %s28, 0
      %p136 = por %p134, %p135
      %s138 = sadd.s32 %s137, 1
      %p141 = scmp.eq.s32.totalorder %s22, 1
      %p142 = scmp.ne.s32.totalorder %s137, %s139
      %p143 = scmp.eq.s32.totalorder %s22, 0
      %p144 = por %p142, %p143
      %p145 = scmp.ne.s32.totalorder %s137, %s139
      %p146 = scmp.eq.s32.totalorder %s27, 1
      %p147 = por %p145, %p146
      %p148 = scmp.ne.s32.totalorder %s139, %s140
      %p149 = scmp.eq.s32.totalorder %s27, 0
      %p150 = por %p148, %p149
      %p151 = scmp.ne.s32.totalorder %s139, %s140
      %p152 = scmp.eq.s32.totalorder %s28, 1
      %p153 = por %p151, %p152
      %p155 = scmp.ne.s32.totalorder %s140, %s154
      %p156 = scmp.eq.s32.totalorder %s28, 0
      %p157 = por %p155, %p156
      %s159 = sadd.s32 %s158, 1
      %p162 = scmp.eq.s32.totalorder %s22, 1
      %p163 = scmp.ne.s32.totalorder %s158, %s160
      %p164 = scmp.eq.s32.totalorder %s22, 0
      %p165 = por %p163, %p164
      %p166 = scmp.ne.s32.totalorder %s158, %s160
      %p167 = scmp.eq.s32.totalorder %s27, 1
      %p168 = por %p166, %p167
      %p169 = scmp.ne.s32.totalorder %s160, %s161
      %p170 = scmp.eq.s32.totalorder %s27, 0
      %p171 = por %p169, %p170
      %p172 = scmp.ne.s32.totalorder %s160, %s161
      %p173 = scmp.eq.s32.totalorder %s28, 1
      %p174 = por %p172, %p173
      %p176 = scmp.ne.s32.totalorder %s161, %s175
      %p177 = scmp.eq.s32.totalorder %s28, 0
      %p178 = por %p176, %p177
      %s180 = sadd.s32 %s179, 1
      %p183 = scmp.eq.s32.totalorder %s22, 1
      %p184 = scmp.ne.s32.totalorder %s179, %s181
      %p185 = scmp.eq.s32.totalorder %s22, 0
      %p186 = por %p184, %p185
      %p187 = scmp.ne.s32.totalorder %s179, %s181
      %p188 = scmp.eq.s32.totalorder %s27, 1
      %p189 = por %p187, %p188
      %p190 = scmp.ne.s32.totalorder %s181, %s182
      %p191 = scmp.eq.s32.totalorder %s27, 0
      %p192 = por %p190, %p191
      %p193 = scmp.ne.s32.totalorder %s181, %s182
      %p194 = scmp.eq.s32.totalorder %s28, 1
      %p195 = por %p193, %p194
      %p197 = scmp.ne.s32.totalorder %s182, %s196
      %p198 = scmp.eq.s32.totalorder %s28, 0
      %p199 = por %p197, %p198
      %s201 = sadd.s32 %s200, 1
      %p204 = scmp.eq.s32.totalorder %s22, 1
      %p205 = scmp.ne.s32.totalorder %s200, %s202
      %p206 = scmp.eq.s32.totalorder %s22, 0
      %p207 = por %p205, %p206
      %p208 = scmp.ne.s32.totalorder %s200, %s202
      %p209 = scmp.eq.s32.totalorder %s27, 1
      %p210 = por %p208, %p209
      %p211 = scmp.ne.s32.totalorder %s202, %s203
      %p212 = scmp.eq.s32.totalorder %s27, 0
      %p213 = por %p211, %p212
      %p214 = scmp.ne.s32.totalorder %s202, %s203
      %p215 = scmp.eq.s32.totalorder %s28, 1
      %p216 = por %p214, %p215
      %p218 = scmp.ne.s32.totalorder %s203, %s217
      %p219 = scmp.eq.s32.totalorder %s28, 0
      %p220 = por %p218, %p219
      %s222 = sadd.s32 %s221, 1
      %p225 = scmp.eq.s32.totalorder %s22, 1
      %p226 = scmp.ne.s32.totalorder %s221, %s223
      %p227 = scmp.eq.s32.totalorder %s22, 0
      %p228 = por %p226, %p227
      %p229 = scmp.ne.s32.totalorder %s221, %s223
      %p230 = scmp.eq.s32.totalorder %s27, 1
      %p231 = por %p229, %p230
      %p232 = scmp.ne.s32.totalorder %s223, %s224
      %p233 = scmp.eq.s32.totalorder %s27, 0
      %p234 = por %p232, %p233
      %p235 = scmp.ne.s32.totalorder %s223, %s224
      %p236 = scmp.eq.s32.totalorder %s28, 1
      %p237 = por %p235, %p236
      %p239 = scmp.ne.s32.totalorder %s224, %s238
      %p240 = scmp.eq.s32.totalorder %s28, 0
      %p241 = por %p239, %p240
      %s243 = sadd.s32 %s242, 1
      %p246 = scmp.eq.s32.totalorder %s22, 1
      %p247 = scmp.ne.s32.totalorder %s242, %s244
      %p248 = scmp.eq.s32.totalorder %s22, 0
      %p249 = por %p247, %p248
      %p250 = scmp.ne.s32.totalorder %s242, %s244
      %p251 = scmp.eq.s32.totalorder %s27, 1
      %p252 = por %p250, %p251
      %p253 = scmp.ne.s32.totalorder %s244, %s245
      %p254 = scmp.eq.s32.totalorder %s27, 0
      %p255 = por %p253, %p254
      %p256 = scmp.ne.s32.totalorder %s244, %s245
      %p257 = scmp.eq.s32.totalorder %s28, 1
      %p258 = por %p256, %p257
      %p260 = scmp.ne.s32.totalorder %s245, %s259
      %p261 = scmp.eq.s32.totalorder %s28, 0
      %p262 = por %p260, %p261
      %s264 = sadd.s32 %s263, 1
      %p267 = scmp.eq.s32.totalorder %s22, 1
      %p268 = scmp.ne.s32.totalorder %s263, %s265
      %p269 = scmp.eq.s32.totalorder %s22, 0
      %p270 = por %p268, %p269
      %p271 = scmp.ne.s32.totalorder %s263, %s265
      %p272 = scmp.eq.s32.totalorder %s27, 1
      %p273 = por %p271, %p272
      %p274 = scmp.ne.s32.totalorder %s265, %s266
      %p275 = scmp.eq.s32.totalorder %s27, 0
      %p276 = por %p274, %p275
      %p277 = scmp.ne.s32.totalorder %s265, %s266
      %p278 = scmp.eq.s32.totalorder %s28, 1
      %p279 = por %p277, %p278
      %p281 = scmp.ne.s32.totalorder %s266, %s280
      %p282 = scmp.eq.s32.totalorder %s28, 0
      %p283 = por %p281, %p282
      %s285 = sadd.s32 %s284, 1
      %p288 = scmp.eq.s32.totalorder %s22, 1
      %p289 = scmp.ne.s32.totalorder %s284, %s286
      %p290 = scmp.eq.s32.totalorder %s22, 0
      %p291 = por %p289, %p290
      %p292 = scmp.ne.s32.totalorder %s284, %s286
      %p293 = scmp.eq.s32.totalorder %s27, 1
      %p294 = por %p292, %p293
      %p295 = scmp.ne.s32.totalorder %s286, %s287
      %p296 = scmp.eq.s32.totalorder %s27, 0
      %p297 = por %p295, %p296
      %p298 = scmp.ne.s32.totalorder %s286, %s287
      %p299 = scmp.eq.s32.totalorder %s28, 1
      %p300 = por %p298, %p299
      %p302 = scmp.ne.s32.totalorder %s287, %s301
      %p303 = scmp.eq.s32.totalorder %s28, 0
      %p304 = por %p302, %p303
      %s306 = sadd.s32 %s305, 1
      %p309 = scmp.eq.s32.totalorder %s22, 1
      %p310 = scmp.ne.s32.totalorder %s305, %s307
      %p311 = scmp.eq.s32.totalorder %s22, 0
      %p312 = por %p310, %p311
      %p313 = scmp.ne.s32.totalorder %s305, %s307
      %p314 = scmp.eq.s32.totalorder %s27, 1
      %p315 = por %p313, %p314
      %p316 = scmp.ne.s32.totalorder %s307, %s308
      %p317 = scmp.eq.s32.totalorder %s27, 0
      %p318 = por %p316, %p317
      %p319 = scmp.ne.s32.totalorder %s307, %s308
      %p320 = scmp.eq.s32.totalorder %s28, 1
      %p321 = por %p319, %p320
      %p323 = scmp.ne.s32.totalorder %s308, %s322
      %p324 = scmp.eq.s32.totalorder %s28, 0
      %p325 = por %p323, %p324
      %s327 = sadd.s32 %s326, 1
      %p330 = scmp.eq.s32.totalorder %s22, 1
      %p331 = scmp.ne.s32.totalorder %s326, %s328
      %p332 = scmp.eq.s32.totalorder %s22, 0
      %p333 = por %p331, %p332
      %p334 = scmp.ne.s32.totalorder %s326, %s328
      %p335 = scmp.eq.s32.totalorder %s27, 1
      %p336 = por %p334, %p335
      %p337 = scmp.ne.s32.totalorder %s328, %s329
      %p338 = scmp.eq.s32.totalorder %s27, 0
      %p339 = por %p337, %p338
      %p340 = scmp.ne.s32.totalorder %s328, %s329
      %p341 = scmp.eq.s32.totalorder %s28, 1
      %p342 = por %p340, %p341
      %p344 = scmp.ne.s32.totalorder %s329, %s343
      %p345 = scmp.eq.s32.totalorder %s28, 0
      %p346 = por %p344, %p345
      %s347 = ssub.s32 %s29, %s48
      %s348 = ssub.s32 %s30, %s44
      %s349 = sor.u32 %s347, %s348
      %p350 = scmp.eq.s32.totalorder %s349, 0
      %s352 = sadd.s32 %s351, 1
      %s353 = scalar_select %p350, %s351, %s352
      %p356 = pneg %p350
      %p357 = scmp.eq.s32.totalorder %s22, 1
      %p358 = por %p356, %p357
      %p359 = scmp.ne.s32.totalorder %s351, %s354
      %p360 = scmp.eq.s32.totalorder %s22, 0
      %p361 = por %p359, %p360
      %p362 = scmp.ne.s32.totalorder %s351, %s354
      %p363 = scmp.eq.s32.totalorder %s27, 1
      %p364 = por %p362, %p363
      %p365 = scmp.ne.s32.totalorder %s354, %s355
      %p366 = scmp.eq.s32.totalorder %s27, 0
      %p367 = por %p365, %p366
      %p368 = scmp.ne.s32.totalorder %s354, %s355
      %p369 = scmp.eq.s32.totalorder %s28, 1
      %p370 = por %p368, %p369
      %p372 = scmp.ne.s32.totalorder %s355, %s371
      %p373 = scmp.eq.s32.totalorder %s28, 0
      %p374 = por %p372, %p373
      %p375 = scmp.le.s32.totalorder 1, %s22
      %p376 = scmp.lt.s32.totalorder %s22, 3
      %p377 = pnand %p375, %p376
      %p378 = pneg %p377
      // Predicated region
      $region9: #{tpu_custom_call.1} parent=5 // pred_check
        _
      $region10: #{tpu_custom_call.1} parent=5 // pred_check_branch
        %380 = sbr.rel (%p377) target = $region12
      $region11: #{tpu_custom_call.1} parent=5 // pred_region
        %s381 = ssub.s32 %s22, 1
        // Predicated region
        $region13: #{tpu_custom_call.1} parent=11 // pred_check
          %p382 = pneg %p150
        $region14: #{tpu_custom_call.1} parent=11 // pred_check_branch
          %384 = sbr.rel (%p382) target = $region16
        $region15: #{tpu_custom_call.1} parent=11 // pred_region
          _
        $region16: #{tpu_custom_call.1} parent=11 // pred_fallthru
          _
        // Predicated region
        $region17: #{tpu_custom_call.1} parent=11 // pred_check
          %p385 = pneg %p171
        $region18: #{tpu_custom_call.1} parent=11 // pred_check_branch
          %387 = sbr.rel (%p385) target = $region20
        $region19: #{tpu_custom_call.1} parent=11 // pred_region
          _
        $region20: #{tpu_custom_call.1} parent=11 // pred_fallthru
          _
        // Predicated region
        $region21: #{tpu_custom_call.1} parent=11 // pred_check
          %p388 = pneg %p192
        $region22: #{tpu_custom_call.1} parent=11 // pred_check_branch
          %390 = sbr.rel (%p388) target = $region24
        $region23: #{tpu_custom_call.1} parent=11 // pred_region
          _
        $region24: #{tpu_custom_call.1} parent=11 // pred_fallthru
          _
        // Predicated region
        $region25: #{tpu_custom_call.1} parent=11 // pred_check
          %p391 = pneg %p213
        $region26: #{tpu_custom_call.1} parent=11 // pred_check_branch
          %393 = sbr.rel (%p391) target = $region28
        $region27: #{tpu_custom_call.1} parent=11 // pred_region
          _
        $region28: #{tpu_custom_call.1} parent=11 // pred_fallthru
          _
        // Predicated region
        $region29: #{tpu_custom_call.1} parent=11 // pred_check
          %p394 = pneg %p234
        $region30: #{tpu_custom_call.1} parent=11 // pred_check_branch
          %396 = sbr.rel (%p394) target = $region32
        $region31: #{tpu_custom_call.1} parent=11 // pred_region
          _
        $region32: #{tpu_custom_call.1} parent=11 // pred_fallthru
          _
        // Predicated region
        $region33: #{tpu_custom_call.1} parent=11 // pred_check
          %p397 = pneg %p255
        $region34: #{tpu_custom_call.1} parent=11 // pred_check_branch
          %399 = sbr.rel (%p397) target = $region36
        $region35: #{tpu_custom_call.1} parent=11 // pred_region
          _
        $region36: #{tpu_custom_call.1} parent=11 // pred_fallthru
          _
        // Predicated region
        $region37: #{tpu_custom_call.1} parent=11 // pred_check
          %p400 = pneg %p276
        $region38: #{tpu_custom_call.1} parent=11 // pred_check_branch
          %402 = sbr.rel (%p400) target = $region40
        $region39: #{tpu_custom_call.1} parent=11 // pred_region
          _
        $region40: #{tpu_custom_call.1} parent=11 // pred_fallthru
          _
        // Predicated region
        $region41: #{tpu_custom_call.1} parent=11 // pred_check
          %p403 = pneg %p297
        $region42: #{tpu_custom_call.1} parent=11 // pred_check_branch
          %405 = sbr.rel (%p403) target = $region44
        $region43: #{tpu_custom_call.1} parent=11 // pred_region
          _
        $region44: #{tpu_custom_call.1} parent=11 // pred_fallthru
          _
        // Predicated region
        $region45: #{tpu_custom_call.1} parent=11 // pred_check
          %p406 = pneg %p318
        $region46: #{tpu_custom_call.1} parent=11 // pred_check_branch
          %408 = sbr.rel (%p406) target = $region48
        $region47: #{tpu_custom_call.1} parent=11 // pred_region
          _
        $region48: #{tpu_custom_call.1} parent=11 // pred_fallthru
          _
        // Predicated region
        $region49: #{tpu_custom_call.1} parent=11 // pred_check
          %p409 = pneg %p339
        $region50: #{tpu_custom_call.1} parent=11 // pred_check_branch
          %411 = sbr.rel (%p409) target = $region52
        $region51: #{tpu_custom_call.1} parent=11 // pred_region
          _
        $region52: #{tpu_custom_call.1} parent=11 // pred_fallthru
          _
      $region12: #{tpu_custom_call.1} parent=5 // pred_fallthru
        _
      %p412 = scmp.lt.s32.totalorder %s22, 2
      // Predicated region
      $region53: #{tpu_custom_call.1} parent=5 // pred_check
        %p413 = pneg %p412
      $region54: #{tpu_custom_call.1} parent=5 // pred_check_branch
        %415 = sbr.rel (%p413) target = $region56
      $region55: #{tpu_custom_call.1} parent=5 // pred_region
        // Predicated region
        $region57: #{tpu_custom_call.1} parent=55 // pred_check
          %p416 = pneg %p63
        $region58: #{tpu_custom_call.1} parent=55 // pred_check_branch
          %418 = sbr.rel (%p416) target = $region60
        $region59: #{tpu_custom_call.1} parent=55 // pred_region
          %s419 = smul.u32 2, %s30
          %p420 = scmp.lt.s32.totalorder %s29, 1
          %s421 = scalar_select %p420, %s29, 1
          %p422 = scmp.lt.s32.totalorder %s419, 1
          %s423 = scalar_select %p422, %s419, 1
          %s424 = smul.addr %s421, 2
          %s425 = sadd.s32 %s423, %s424
          %s426 = smul.addr %s425, 8
          %s427 = scalar_lea.vmem %s0, %s426
          %s428 = smul.u32 2, %s30
        $region60: #{tpu_custom_call.1} parent=55 // pred_fallthru
          _
        // Predicated region
        $region61: #{tpu_custom_call.1} parent=55 // pred_check
          %p429 = pneg %p93
        $region62: #{tpu_custom_call.1} parent=55 // pred_check_branch
          %431 = sbr.rel (%p429) target = $region64
        $region63: #{tpu_custom_call.1} parent=55 // pred_region
          %s432 = smul.u32 16, %s31
          %s433 = smul.u32 2, %s30
          %p434 = scmp.lt.s32.totalorder %s29, 1
          %s435 = scalar_select %p434, %s29, 1
          %p436 = scmp.lt.s32.totalorder %s432, 15
          %s437 = scalar_select %p436, %s432, 15
          %p438 = scmp.lt.s32.totalorder %s433, 1
          %s439 = scalar_select %p438, %s433, 1
          %s440 = smul.addr %s437, 2
          %s441 = sadd.s32 %s439, %s440
          %s442 = smul.addr %s435, 32
          %s443 = sadd.s32 %s441, %s442
          %s444 = smul.addr %s443, 4
          %s445 = scalar_lea.vmem %s1, %s444
          %s446 = smul.u32 16, %s31
          %s447 = smul.u32 2, %s30
        $region64: #{tpu_custom_call.1} parent=55 // pred_fallthru
          _
        // Predicated region
        $region65: #{tpu_custom_call.1} parent=55 // pred_check
          %p448 = pneg %p123
        $region66: #{tpu_custom_call.1} parent=55 // pred_check_branch
          %450 = sbr.rel (%p448) target = $region68
        $region67: #{tpu_custom_call.1} parent=55 // pred_region
          %s451 = smul.u32 16, %s31
          %s452 = smul.u32 2, %s30
          %p453 = scmp.lt.s32.totalorder %s29, 1
          %s454 = scalar_select %p453, %s29, 1
          %p455 = scmp.lt.s32.totalorder %s451, 15
          %s456 = scalar_select %p455, %s451, 15
          %p457 = scmp.lt.s32.totalorder %s452, 1
          %s458 = scalar_select %p457, %s452, 1
          %s459 = smul.addr %s456, 2
          %s460 = sadd.s32 %s458, %s459
          %s461 = smul.addr %s454, 32
          %s462 = sadd.s32 %s460, %s461
          %s463 = smul.addr %s462, 4
          %s464 = scalar_lea.vmem %s2, %s463
          %s465 = smul.u32 16, %s31
          %s466 = smul.u32 2, %s30
        $region68: #{tpu_custom_call.1} parent=55 // pred_fallthru
          _
      $region56: #{tpu_custom_call.1} parent=5 // pred_fallthru
        _
      %p467 = scmp.le.s32.totalorder 1, %s22
      %p468 = scmp.lt.s32.totalorder %s22, 3
      %p469 = pnand %p467, %p468
      %p470 = pneg %p469
      // Predicated region
      $region69: #{tpu_custom_call.1} parent=5 // pred_check
        _
      $region70: #{tpu_custom_call.1} parent=5 // pred_check_branch
        %472 = sbr.rel (%p469) target = $region72
      $region71: #{tpu_custom_call.1} parent=5 // pred_region
        %s473 = ssub.s32 %s22, 1
        %s474 = smul.u32 2, %s33
        %p475 = scmp.lt.s32.totalorder %s32, 1
        %s476 = scalar_select %p475, %s32, 1
        %p477 = scmp.lt.s32.totalorder %s474, 1
        %s478 = scalar_select %p477, %s474, 1
        %s479 = smul.addr %s476, 2
        %s480 = sadd.s32 %s478, %s479
        %s481 = smul.addr %s480, 8
        %s482 = scalar_lea.vmem %s0, %s481
        %p483 = pneg %p69
        %p484 = pneg %p66
        %s485 = smul.u32 16, %s34
        %s486 = smul.u32 2, %s33
        %p487 = scmp.lt.s32.totalorder %s32, 1
        %s488 = scalar_select %p487, %s32, 1
        %p489 = scmp.lt.s32.totalorder %s485, 15
        %s490 = scalar_select %p489, %s485, 15
        %p491 = scmp.lt.s32.totalorder %s486, 1
        %s492 = scalar_select %p491, %s486, 1
        %s493 = smul.addr %s490, 2
        %s494 = sadd.s32 %s492, %s493
        %s495 = smul.addr %s488, 32
        %s496 = sadd.s32 %s494, %s495
        %s497 = smul.addr %s496, 4
        %s498 = scalar_lea.vmem %s1, %s497
        %p499 = pneg %p99
        %p500 = pneg %p96
        %s501 = smul.u32 16, %s34
        %s502 = smul.u32 2, %s33
        %p503 = scmp.lt.s32.totalorder %s32, 1
        %s504 = scalar_select %p503, %s32, 1
        %p505 = scmp.lt.s32.totalorder %s501, 15
        %s506 = scalar_select %p505, %s501, 15
        %p507 = scmp.lt.s32.totalorder %s502, 1
        %s508 = scalar_select %p507, %s502, 1
        %s509 = smul.addr %s506, 2
        %s510 = sadd.s32 %s508, %s509
        %s511 = smul.addr %s504, 32
        %s512 = sadd.s32 %s510, %s511
        %s513 = smul.addr %s512, 4
        %s514 = scalar_lea.vmem %s2, %s513
        %p515 = pneg %p129
        %p516 = pneg %p126
        %p517 = pneg %p150
        %p518 = pneg %p147
        %p519 = pneg %p171
        %p520 = pneg %p168
        %p521 = pneg %p192
        %p522 = pneg %p189
        %p523 = pneg %p213
        %p524 = pneg %p210
        %p525 = pneg %p234
        %p526 = pneg %p231
        %p527 = pneg %p255
        %p528 = pneg %p252
        %p529 = pneg %p276
        %p530 = pneg %p273
        %p531 = pneg %p297
        %p532 = pneg %p294
        %p533 = pneg %p318
        %p534 = pneg %p315
        %p535 = pneg %p339
        %p536 = pneg %p336
        %p537 = pneg %p367
        %p538 = pneg %p364
        %s539 = sand.u32 %s354, 1
        %s540 = scalar_lea.sflag [#allocation5], %s539
        %s541 = sand.u32 %s354, 1
        %s542 = smul.addr %s541, 16
        %s543 = scalar_lea.vmem [#allocation4], %s542
        %s544 = smul.u32 2, %s33
        %p545 = scmp.lt.s32.totalorder %s32, 1
        %s546 = scalar_select %p545, %s32, 1
        %p547 = scmp.lt.s32.totalorder %s544, 1
        %s548 = scalar_select %p547, %s544, 1
        %s549 = smul.addr %s546, 2
        %s550 = sadd.s32 %s548, %s549
        %s551 = smul.addr %s550, 8
        %s552 = scalar_lea.vmem %s0, %s551
        %s553 = smul.u32 2, %s33
        %s554 = smul.u32 16, %s34
        %s555 = smul.u32 2, %s33
        %p556 = scmp.lt.s32.totalorder %s32, 1
        %s557 = scalar_select %p556, %s32, 1
        %p558 = scmp.lt.s32.totalorder %s554, 15
        %s559 = scalar_select %p558, %s554, 15
        %p560 = scmp.lt.s32.totalorder %s555, 1
        %s561 = scalar_select %p560, %s555, 1
        %s562 = smul.addr %s559, 2
        %s563 = sadd.s32 %s561, %s562
        %s564 = smul.addr %s557, 32
        %s565 = sadd.s32 %s563, %s564
        %s566 = smul.addr %s565, 4
        %s567 = scalar_lea.vmem %s1, %s566
        %s568 = smul.u32 16, %s34
        %s569 = smul.u32 2, %s33
        %s570 = smul.u32 16, %s34
        %s571 = smul.u32 2, %s33
        %p572 = scmp.lt.s32.totalorder %s32, 1
        %s573 = scalar_select %p572, %s32, 1
        %p574 = scmp.lt.s32.totalorder %s570, 15
        %s575 = scalar_select %p574, %s570, 15
        %p576 = scmp.lt.s32.totalorder %s571, 1
        %s577 = scalar_select %p576, %s571, 1
        %s578 = smul.addr %s575, 2
        %s579 = sadd.s32 %s577, %s578
        %s580 = smul.addr %s573, 32
        %s581 = sadd.s32 %s579, %s580
        %s582 = smul.addr %s581, 4
        %s583 = scalar_lea.vmem %s2, %s582
        %s584 = smul.u32 16, %s34
        %s585 = smul.u32 2, %s33
        %s586 = smul.u32 2, %s33
        %p588 = scmp.eq.s32.totalorder %s34, 0
        // Predicated region
        $region73: #{tpu_custom_call.1} parent=71 // pred_check
          %p589 = pneg %p588
        $region74: #{tpu_custom_call.1} parent=71 // pred_check_branch
          %591 = sbr.rel (%p589) target = $region76
        $region75: #{tpu_custom_call.1} parent=71 // pred_region
          %vm592 = vcmask 130048
          %593 = vst.msk [vmem:[#allocation3] sm:$0xff] %vm592, 0.0
          %594 = vst.msk [vmem:[#allocation3 + $0x8] sm:$0xff] %vm592, 0.0
          %v595 = vld [vmem:[%s552] sm:$0xff]
          %v596 = vld [vmem:[%s552 + $0x8] sm:$0xff]
          %v597 = vpack.c.bf16 %v596, %v595
          %v598 = vld [vmem:[%s3] sm:$0xff]
          %v599 = vld [vmem:[%s3 + $0x8] sm:$0xff]
          %v600 = vld [vmem:[%s3 + $0x10] sm:$0xff]
          %v601 = vld [vmem:[%s3 + $0x18] sm:$0xff]
          %v602 = vld [vmem:[%s5] sm:$0x3]
          %v604 = vlaneseq
          %v605 = vshrl.u32 %v604, 7
          %v606 = vsub.s32 0, %v605
          %v607 = vrot.slane %v602, %v606
          %v608 = vlaneseq
          %v609 = vshrl.u32 %v608, 7
          %v610 = vsub.s32 1, %v609
          %v611 = vrot.slane %v602, %v610
          %v618 = vunpack.c.l.b16 %v598
          %v619 = vunpack.c.h.b16 %v598
          %v620 = vunpack.c.l.b16 %v599
          %v621 = vunpack.c.h.b16 %v599
          %v622 = vunpack.c.l.b16 %v600
          %v623 = vunpack.c.h.b16 %v600
          %v624 = vunpack.c.l.b16 %v601
          %v625 = vunpack.c.h.b16 %v601
          %v626 = vpack.c.b16 %v620, %v618
          %v627 = vpack.c.b16 %v621, %v619
          %v628 = vpack.c.b16 %v624, %v622
          %v629 = vpack.c.b16 %v625, %v623
          %vm634 = vcmask 261120
          %v636 = vsel %vm634, %v597, 0
          %638 = vmatprep.subr.bf16.mxu0 0
          %639 = vmatpush1.bf16.msra.mxu0 0
          %640 = vmatprep.subr.bf16.mxu0 0
          %641 = vmatpush1.bf16.msra.mxu0 0
          %642 = vmatprep.subr.bf16.mxu0 0
          %643 = vmatpush1.bf16.msra.mxu0 0
          %644 = vmatprep.subr.bf16.mxu0 0
          %645 = vmatpush1.bf16.msra.mxu0 0
          %646 = vmatprep.subr.bf16.mxu0 0
          %647 = vmatpush1.bf16.msra.mxu0 0
          %648 = vmatprep.subr.bf16.mxu0 0
          %649 = vmatpush1.bf16.msra.mxu0 0
          %650 = vmatprep.subr.bf16.mxu0 %v629
          %651 = vmatpush1.bf16.msra.mxu0 %v628
          %652 = vmatprep.subr.bf16.mxu0 %v627
          %653 = vmatpush1.bf16.msra.mxu0 %v626
          %654 = vmatprep.subr.bf16.mxu0 0
          %655 = vmatpush2.bf16.msra.mxu0 0
          %656 = vmatprep.subr.bf16.mxu0 0
          %657 = vmatpush2.bf16.msra.mxu0 0
          %658 = vmatprep.subr.bf16.mxu0 0
          %659 = vmatpush2.bf16.msra.mxu0 0
          %660 = vmatprep.subr.bf16.mxu0 0
          %661 = vmatpush2.bf16.msra.mxu0 0
          %662 = vmatprep.subr.bf16.mxu0 0
          %663 = vmatpush2.bf16.msra.mxu0 0
          %664 = vmatprep.subr.bf16.mxu0 0
          %665 = vmatpush2.bf16.msra.mxu0 0
          %666 = vmatprep.subr.bf16.mxu0 0
          %667 = vmatpush2.bf16.msra.mxu0 0
          %668 = vmatprep.subr.bf16.mxu0 0
          %669 = vmatpush2.bf16.msra.mxu0 0
          %670 = vmatprep.mubr.bf16.mxu0 0
          %671 = vmatmul.mubr.bf16.gmra.mxu0 %v636
          %v672 = vpop.f32.mrf.mxu0
          %v673 = vadd.f32 %v607, %v672
          %v674 = vpop.f32.mrf.mxu0
          %v675 = vadd.f32 %v611, %v674
          %v676 = vpop.f32.mrf.mxu0
          %v677 = vadd.f32 %v607, %v676
          %v678 = vpop.f32.mrf.mxu0
          %v679 = vadd.f32 %v611, %v678
          %680 = vdwg.mxu0
          %681 = vst [vmem:[#allocation2] sm:$0xff] %v673
          %682 = vst [vmem:[#allocation2 + $0x8] sm:$0xff] %v675
          %683 = vst [vmem:[#allocation2 + $0x10] sm:$0xff] %v677
          %684 = vst [vmem:[#allocation2 + $0x18] sm:$0xff] %v679
        $region76: #{tpu_custom_call.1} parent=71 // pred_fallthru
          _
        %v685 = vld [vmem:[%s567] sm:$0xf]
        %v686 = vld [vmem:[%s567 + $0x4] sm:$0xf]
        %v687 = vld [vmem:[%s567 + $0x8] sm:$0xf]
        %v688 = vld [vmem:[%s567 + $0xc] sm:$0xf]
        %v689 = vld [vmem:[%s567 + $0x10] sm:$0xf]
        %v690 = vld [vmem:[%s567 + $0x14] sm:$0xf]
        %v691 = vld [vmem:[%s567 + $0x18] sm:$0xf]
        %v692 = vld [vmem:[%s567 + $0x1c] sm:$0xf]
        %v693 = vld [vmem:[%s567 + $0x20] sm:$0xf]
        %v694 = vld [vmem:[%s567 + $0x24] sm:$0xf]
        %v695 = vld [vmem:[%s567 + $0x28] sm:$0xf]
        %v696 = vld [vmem:[%s567 + $0x2c] sm:$0xf]
        %v697 = vld [vmem:[%s567 + $0x30] sm:$0xf]
        %v698 = vld [vmem:[%s567 + $0x34] sm:$0xf]
        %v699 = vld [vmem:[%s567 + $0x38] sm:$0xf]
        %v700 = vld [vmem:[%s567 + $0x3c] sm:$0xf]
        %v701 = vld [vmem:[%s567 + $0x40] sm:$0xf]
        %v702 = vld [vmem:[%s567 + $0x44] sm:$0xf]
        %v703 = vld [vmem:[%s567 + $0x48] sm:$0xf]
        %v704 = vld [vmem:[%s567 + $0x4c] sm:$0xf]
        %v705 = vld [vmem:[%s567 + $0x50] sm:$0xf]
        %v706 = vld [vmem:[%s567 + $0x54] sm:$0xf]
        %v707 = vld [vmem:[%s567 + $0x58] sm:$0xf]
        %v708 = vld [vmem:[%s567 + $0x5c] sm:$0xf]
        %v709 = vld [vmem:[%s567 + $0x60] sm:$0xf]
        %v710 = vld [vmem:[%s567 + $0x64] sm:$0xf]
        %v711 = vld [vmem:[%s567 + $0x68] sm:$0xf]
        %v712 = vld [vmem:[%s567 + $0x6c] sm:$0xf]
        %v713 = vld [vmem:[%s567 + $0x70] sm:$0xf]
        %v714 = vld [vmem:[%s567 + $0x74] sm:$0xf]
        %v715 = vld [vmem:[%s567 + $0x78] sm:$0xf]
        %v716 = vld [vmem:[%s567 + $0x7c] sm:$0xf]
        %v717 = vld [vmem:[%s4] sm:$0xff]
        %v718 = vld [vmem:[%s4 + $0x8] sm:$0xff]
        %v719 = vld [vmem:[%s4 + $0x10] sm:$0xff]
        %v720 = vld [vmem:[%s4 + $0x18] sm:$0xff]
        %v721 = vld [vmem:[%s4 + $0x20] sm:$0x11]
        %v754 = vunpack.c.l.b16 %v685
        %v755 = vunpack.c.l.b16 %v686
        %v756 = vunpack.c.l.b16 %v687
        %v757 = vunpack.c.l.b16 %v688
        %v758 = vunpack.c.l.b16 %v689
        %v759 = vunpack.c.l.b16 %v690
        %v760 = vunpack.c.l.b16 %v691
        %v761 = vunpack.c.l.b16 %v692
        %v762 = vunpack.c.l.b16 %v693
        %v763 = vunpack.c.l.b16 %v694
        %v764 = vunpack.c.l.b16 %v695
        %v765 = vunpack.c.l.b16 %v696
        %v766 = vunpack.c.l.b16 %v697
        %v767 = vunpack.c.l.b16 %v698
        %v768 = vunpack.c.l.b16 %v699
        %v769 = vunpack.c.l.b16 %v700
        %v770 = vunpack.c.l.b16 %v701
        %v771 = vunpack.c.l.b16 %v702
        %v772 = vunpack.c.l.b16 %v703
        %v773 = vunpack.c.l.b16 %v704
        %v774 = vunpack.c.l.b16 %v705
        %v775 = vunpack.c.l.b16 %v706
        %v776 = vunpack.c.l.b16 %v707
        %v777 = vunpack.c.l.b16 %v708
        %v778 = vunpack.c.l.b16 %v709
        %v779 = vunpack.c.l.b16 %v710
        %v780 = vunpack.c.l.b16 %v711
        %v781 = vunpack.c.l.b16 %v712
        %v782 = vunpack.c.l.b16 %v713
        %v783 = vunpack.c.l.b16 %v714
        %v784 = vunpack.c.l.b16 %v715
        %v785 = vunpack.c.l.b16 %v716
        %v786 = vpack.c.b16 %v755, %v754
        %v787 = vpack.c.b16 %v757, %v756
        %v788 = vpack.c.b16 %v759, %v758
        %v789 = vpack.c.b16 %v761, %v760
        %v790 = vpack.c.b16 %v763, %v762
        %v791 = vpack.c.b16 %v765, %v764
        %v792 = vpack.c.b16 %v767, %v766
        %v793 = vpack.c.b16 %v769, %v768
        %v794 = vpack.c.b16 %v771, %v770
        %v795 = vpack.c.b16 %v773, %v772
        %v796 = vpack.c.b16 %v775, %v774
        %v797 = vpack.c.b16 %v777, %v776
        %v798 = vpack.c.b16 %v779, %v778
        %v799 = vpack.c.b16 %v781, %v780
        %v800 = vpack.c.b16 %v783, %v782
        %v801 = vpack.c.b16 %v785, %v784
        %v807 = vunpack.c.l.b16 %v717
        %v808 = vunpack.c.h.b16 %v717
        %v809 = vunpack.c.l.b16 %v718
        %v810 = vunpack.c.h.b16 %v718
        %v811 = vunpack.c.l.b16 %v719
        %v812 = vunpack.c.h.b16 %v719
        %v813 = vunpack.c.l.b16 %v720
        %v814 = vunpack.c.h.b16 %v720
        %v815 = vunpack.c.l.b16 %v721
        %v816 = vunpack.c.h.b16 %v721
        %v817 = vpack.c.b16 %v809, %v807
        %v818 = vpack.c.b16 %v810, %v808
        %v819 = vpack.c.b16 %v813, %v811
        %v820 = vpack.c.b16 %v814, %v812
        %v821 = vpack.c.b16 %v815, %v815
        %v822 = vpack.c.b16 %v816, %v816
        %vm827 = vcmask 269312
        %v829 = vsel %vm827, %v786, 0
        %v832 = vsel %vm827, %v787, 0
        %v835 = vsel %vm827, %v788, 0
        %v838 = vsel %vm827, %v789, 0
        %v841 = vsel %vm827, %v790, 0
        %v844 = vsel %vm827, %v791, 0
        %v847 = vsel %vm827, %v792, 0
        %v850 = vsel %vm827, %v793, 0
        %v853 = vsel %vm827, %v794, 0
        %v856 = vsel %vm827, %v795, 0
        %v859 = vsel %vm827, %v796, 0
        %v862 = vsel %vm827, %v797, 0
        %v865 = vsel %vm827, %v798, 0
        %v868 = vsel %vm827, %v799, 0
        %v871 = vsel %vm827, %v800, 0
        %v874 = vsel %vm827, %v801, 0
        %vm876 = vcmask 1040384
        %v877 = vsel 0, 4294967295, 65535
        %v878 = vsel %vm876, %v877, 0
        %v880 = vand.u32 %v821, %v878
        %v883 = vand.u32 %v822, %v878
        %885 = vmatprep.subr.bf16.mxu0 0
        %886 = vmatpush1.bf16.msra.mxu0 0
        %887 = vmatprep.subr.bf16.mxu0 0
        %888 = vmatpush1.bf16.msra.mxu0 0
        %889 = vmatprep.subr.bf16.mxu0 0
        %890 = vmatpush1.bf16.msra.mxu0 0
        %891 = vmatprep.subr.bf16.mxu0 0
        %892 = vmatpush1.bf16.msra.mxu0 0
        %893 = vmatprep.subr.bf16.mxu0 0
        %894 = vmatpush1.bf16.msra.mxu0 0
        %895 = vmatprep.subr.bf16.mxu0 %v883
        %896 = vmatpush1.bf16.msra.mxu0 %v880
        %897 = vmatprep.subr.bf16.mxu0 %v820
        %898 = vmatpush1.bf16.msra.mxu0 %v819
        %899 = vmatprep.subr.bf16.mxu0 %v818
        %900 = vmatpush1.bf16.msra.mxu0 %v817
        %901 = vmatprep.subr.bf16.mxu0 0
        %902 = vmatpush2.bf16.msra.mxu0 0
        %903 = vmatprep.subr.bf16.mxu0 0
        %904 = vmatpush2.bf16.msra.mxu0 0
        %905 = vmatprep.subr.bf16.mxu0 0
        %906 = vmatpush2.bf16.msra.mxu0 0
        %907 = vmatprep.subr.bf16.mxu0 0
        %908 = vmatpush2.bf16.msra.mxu0 0
        %909 = vmatprep.subr.bf16.mxu0 0
        %910 = vmatpush2.bf16.msra.mxu0 0
        %911 = vmatprep.subr.bf16.mxu0 0
        %912 = vmatpush2.bf16.msra.mxu0 0
        %913 = vmatprep.subr.bf16.mxu0 0
        %914 = vmatpush2.bf16.msra.mxu0 0
        %915 = vmatprep.subr.bf16.mxu0 0
        %916 = vmatpush2.bf16.msra.mxu0 0
        %917 = vmatprep.mubr.bf16.mxu0 0
        %918 = vmatmul.mubr.bf16.gmra.mxu0 %v829
        %v919 = vpop.f32.mrf.mxu0
        %v920 = vadd.f32 0.0, %v919
        %v921 = vpop.f32.mrf.mxu0
        %v922 = vadd.f32 0.0, %v921
        %v923 = vpop.f32.mrf.mxu0
        %v924 = vadd.f32 0.0, %v923
        %v925 = vpop.f32.mrf.mxu0
        %v926 = vadd.f32 0.0, %v925
        %927 = vmatprep.mubr.bf16.mxu0 0
        %928 = vmatmul.mubr.bf16.gmra.mxu0 %v832
        %v929 = vpop.f32.mrf.mxu0
        %v930 = vadd.f32 0.0, %v929
        %v931 = vpop.f32.mrf.mxu0
        %v932 = vadd.f32 0.0, %v931
        %v933 = vpop.f32.mrf.mxu0
        %v934 = vadd.f32 0.0, %v933
        %v935 = vpop.f32.mrf.mxu0
        %v936 = vadd.f32 0.0, %v935
        %937 = vmatprep.mubr.bf16.mxu0 0
        %938 = vmatmul.mubr.bf16.gmra.mxu0 %v835
        %v939 = vpop.f32.mrf.mxu0
        %v940 = vadd.f32 0.0, %v939
        %v941 = vpop.f32.mrf.mxu0
        %v942 = vadd.f32 0.0, %v941
        %v943 = vpop.f32.mrf.mxu0
        %v944 = vadd.f32 0.0, %v943
        %v945 = vpop.f32.mrf.mxu0
        %v946 = vadd.f32 0.0, %v945
        %947 = vmatprep.mubr.bf16.mxu0 0
        %948 = vmatmul.mubr.bf16.gmra.mxu0 %v838
        %v949 = vpop.f32.mrf.mxu0
        %v950 = vadd.f32 0.0, %v949
        %v951 = vpop.f32.mrf.mxu0
        %v952 = vadd.f32 0.0, %v951
        %v953 = vpop.f32.mrf.mxu0
        %v954 = vadd.f32 0.0, %v953
        %v955 = vpop.f32.mrf.mxu0
        %v956 = vadd.f32 0.0, %v955
        %957 = vmatprep.mubr.bf16.mxu0 0
        %958 = vmatmul.mubr.bf16.gmra.mxu0 %v841
        %v959 = vpop.f32.mrf.mxu0
        %v960 = vadd.f32 0.0, %v959
        %v961 = vpop.f32.mrf.mxu0
        %v962 = vadd.f32 0.0, %v961
        %v963 = vpop.f32.mrf.mxu0
        %v964 = vadd.f32 0.0, %v963
        %v965 = vpop.f32.mrf.mxu0
        %v966 = vadd.f32 0.0, %v965
        %967 = vmatprep.mubr.bf16.mxu0 0
        %968 = vmatmul.mubr.bf16.gmra.mxu0 %v844
        %v969 = vpop.f32.mrf.mxu0
        %v970 = vadd.f32 0.0, %v969
        %v971 = vpop.f32.mrf.mxu0
        %v972 = vadd.f32 0.0, %v971
        %v973 = vpop.f32.mrf.mxu0
        %v974 = vadd.f32 0.0, %v973
        %v975 = vpop.f32.mrf.mxu0
        %v976 = vadd.f32 0.0, %v975
        %977 = vmatprep.mubr.bf16.mxu0 0
        %978 = vmatmul.mubr.bf16.gmra.mxu0 %v847
        %v979 = vpop.f32.mrf.mxu0
        %v980 = vadd.f32 0.0, %v979
        %v981 = vpop.f32.mrf.mxu0
        %v982 = vadd.f32 0.0, %v981
        %v983 = vpop.f32.mrf.mxu0
        %v984 = vadd.f32 0.0, %v983
        %v985 = vpop.f32.mrf.mxu0
        %v986 = vadd.f32 0.0, %v985
        %987 = vmatprep.mubr.bf16.mxu0 0
        %988 = vmatmul.mubr.bf16.gmra.mxu0 %v850
        %v989 = vpop.f32.mrf.mxu0
        %v990 = vadd.f32 0.0, %v989
        %v991 = vpop.f32.mrf.mxu0
        %v992 = vadd.f32 0.0, %v991
        %v993 = vpop.f32.mrf.mxu0
        %v994 = vadd.f32 0.0, %v993
        %v995 = vpop.f32.mrf.mxu0
        %v996 = vadd.f32 0.0, %v995
        %997 = vmatprep.mubr.bf16.mxu0 0
        %998 = vmatmul.mubr.bf16.gmra.mxu0 %v853
        %v999 = vpop.f32.mrf.mxu0
        %v1000 = vadd.f32 0.0, %v999
        %v1001 = vpop.f32.mrf.mxu0
        %v1002 = vadd.f32 0.0, %v1001
        %v1003 = vpop.f32.mrf.mxu0
        %v1004 = vadd.f32 0.0, %v1003
        %v1005 = vpop.f32.mrf.mxu0
        %v1006 = vadd.f32 0.0, %v1005
        %1007 = vmatprep.mubr.bf16.mxu0 0
        %1008 = vmatmul.mubr.bf16.gmra.mxu0 %v856
        %v1009 = vpop.f32.mrf.mxu0
        %v1010 = vadd.f32 0.0, %v1009
        %v1011 = vpop.f32.mrf.mxu0
        %v1012 = vadd.f32 0.0, %v1011
        %v1013 = vpop.f32.mrf.mxu0
        %v1014 = vadd.f32 0.0, %v1013
        %v1015 = vpop.f32.mrf.mxu0
        %v1016 = vadd.f32 0.0, %v1015
        %1017 = vmatprep.mubr.bf16.mxu0 0
        %1018 = vmatmul.mubr.bf16.gmra.mxu0 %v859
        %v1019 = vpop.f32.mrf.mxu0
        %v1020 = vadd.f32 0.0, %v1019
        %v1021 = vpop.f32.mrf.mxu0
        %v1022 = vadd.f32 0.0, %v1021
        %v1023 = vpop.f32.mrf.mxu0
        %v1024 = vadd.f32 0.0, %v1023
        %v1025 = vpop.f32.mrf.mxu0
        %v1026 = vadd.f32 0.0, %v1025
        %1027 = vmatprep.mubr.bf16.mxu0 0
        %1028 = vmatmul.mubr.bf16.gmra.mxu0 %v862
        %v1029 = vpop.f32.mrf.mxu0
        %v1030 = vadd.f32 0.0, %v1029
        %v1031 = vpop.f32.mrf.mxu0
        %v1032 = vadd.f32 0.0, %v1031
        %v1033 = vpop.f32.mrf.mxu0
        %v1034 = vadd.f32 0.0, %v1033
        %v1035 = vpop.f32.mrf.mxu0
        %v1036 = vadd.f32 0.0, %v1035
        %1037 = vmatprep.mubr.bf16.mxu0 0
        %1038 = vmatmul.mubr.bf16.gmra.mxu0 %v865
        %v1039 = vpop.f32.mrf.mxu0
        %v1040 = vadd.f32 0.0, %v1039
        %v1041 = vpop.f32.mrf.mxu0
        %v1042 = vadd.f32 0.0, %v1041
        %v1043 = vpop.f32.mrf.mxu0
        %v1044 = vadd.f32 0.0, %v1043
        %v1045 = vpop.f32.mrf.mxu0
        %v1046 = vadd.f32 0.0, %v1045
        %1047 = vmatprep.mubr.bf16.mxu0 0
        %1048 = vmatmul.mubr.bf16.gmra.mxu0 %v868
        %v1049 = vpop.f32.mrf.mxu0
        %v1050 = vadd.f32 0.0, %v1049
        %v1051 = vpop.f32.mrf.mxu0
        %v1052 = vadd.f32 0.0, %v1051
        %v1053 = vpop.f32.mrf.mxu0
        %v1054 = vadd.f32 0.0, %v1053
        %v1055 = vpop.f32.mrf.mxu0
        %v1056 = vadd.f32 0.0, %v1055
        %1057 = vmatprep.mubr.bf16.mxu0 0
        %1058 = vmatmul.mubr.bf16.gmra.mxu0 %v871
        %v1059 = vpop.f32.mrf.mxu0
        %v1060 = vadd.f32 0.0, %v1059
        %v1061 = vpop.f32.mrf.mxu0
        %v1062 = vadd.f32 0.0, %v1061
        %v1063 = vpop.f32.mrf.mxu0
        %v1064 = vadd.f32 0.0, %v1063
        %v1065 = vpop.f32.mrf.mxu0
        %v1066 = vadd.f32 0.0, %v1065
        %1067 = vmatprep.mubr.bf16.mxu0 0
        %1068 = vmatmul.mubr.bf16.gmra.mxu0 %v874
        %v1069 = vpop.f32.mrf.mxu0
        %v1070 = vadd.f32 0.0, %v1069
        %v1071 = vpop.f32.mrf.mxu0
        %v1072 = vadd.f32 0.0, %v1071
        %v1073 = vpop.f32.mrf.mxu0
        %v1074 = vadd.f32 0.0, %v1073
        %v1075 = vpop.f32.mrf.mxu0
        %v1076 = vadd.f32 0.0, %v1075
        %1077 = vdwg.mxu0
        %v1078 = vld [vmem:[#allocation2] sm:$0xff]
        %v1079 = vld [vmem:[#allocation2 + $0x8] sm:$0xff]
        %v1080 = vld [vmem:[#allocation2 + $0x10] sm:$0xff]
        %v1081 = vld [vmem:[#allocation2 + $0x18] sm:$0xff]
        %v1082 = vadd.f32 %v920, %v1078
        %v1083 = vadd.f32 %v922, %v1079
        %v1084 = vadd.f32 %v924, %v1080
        %v1085 = vadd.f32 %v926, %v1081
        %v1086 = vadd.f32 %v930, %v1078
        %v1087 = vadd.f32 %v932, %v1079
        %v1088 = vadd.f32 %v934, %v1080
        %v1089 = vadd.f32 %v936, %v1081
        %v1090 = vadd.f32 %v940, %v1078
        %v1091 = vadd.f32 %v942, %v1079
        %v1092 = vadd.f32 %v944, %v1080
        %v1093 = vadd.f32 %v946, %v1081
        %v1094 = vadd.f32 %v950, %v1078
        %v1095 = vadd.f32 %v952, %v1079
        %v1096 = vadd.f32 %v954, %v1080
        %v1097 = vadd.f32 %v956, %v1081
        %v1098 = vadd.f32 %v960, %v1078
        %v1099 = vadd.f32 %v962, %v1079
        %v1100 = vadd.f32 %v964, %v1080
        %v1101 = vadd.f32 %v966, %v1081
        %v1102 = vadd.f32 %v970, %v1078
        %v1103 = vadd.f32 %v972, %v1079
        %v1104 = vadd.f32 %v974, %v1080
        %v1105 = vadd.f32 %v976, %v1081
        %v1106 = vadd.f32 %v980, %v1078
        %v1107 = vadd.f32 %v982, %v1079
        %v1108 = vadd.f32 %v984, %v1080
        %v1109 = vadd.f32 %v986, %v1081
        %v1110 = vadd.f32 %v990, %v1078
        %v1111 = vadd.f32 %v992, %v1079
        %v1112 = vadd.f32 %v994, %v1080
        %v1113 = vadd.f32 %v996, %v1081
        %v1114 = vadd.f32 %v1000, %v1078
        %v1115 = vadd.f32 %v1002, %v1079
        %v1116 = vadd.f32 %v1004, %v1080
        %v1117 = vadd.f32 %v1006, %v1081
        %v1118 = vadd.f32 %v1010, %v1078
        %v1119 = vadd.f32 %v1012, %v1079
        %v1120 = vadd.f32 %v1014, %v1080
        %v1121 = vadd.f32 %v1016, %v1081
        %v1122 = vadd.f32 %v1020, %v1078
        %v1123 = vadd.f32 %v1022, %v1079
        %v1124 = vadd.f32 %v1024, %v1080
        %v1125 = vadd.f32 %v1026, %v1081
        %v1126 = vadd.f32 %v1030, %v1078
        %v1127 = vadd.f32 %v1032, %v1079
        %v1128 = vadd.f32 %v1034, %v1080
        %v1129 = vadd.f32 %v1036, %v1081
        %v1130 = vadd.f32 %v1040, %v1078
        %v1131 = vadd.f32 %v1042, %v1079
        %v1132 = vadd.f32 %v1044, %v1080
        %v1133 = vadd.f32 %v1046, %v1081
        %v1134 = vadd.f32 %v1050, %v1078
        %v1135 = vadd.f32 %v1052, %v1079
        %v1136 = vadd.f32 %v1054, %v1080
        %v1137 = vadd.f32 %v1056, %v1081
        %v1138 = vadd.f32 %v1060, %v1078
        %v1139 = vadd.f32 %v1062, %v1079
        %v1140 = vadd.f32 %v1064, %v1080
        %v1141 = vadd.f32 %v1066, %v1081
        %v1142 = vadd.f32 %v1070, %v1078
        %v1143 = vadd.f32 %v1072, %v1079
        %v1144 = vadd.f32 %v1074, %v1080
        %v1145 = vadd.f32 %v1076, %v1081
        %v1146 = vxor.u32 %v1082, 2147483648
        %v1147 = vxor.u32 %v1083, 2147483648
        %v1148 = vxor.u32 %v1084, 2147483648
        %v1149 = vxor.u32 %v1085, 2147483648
        %v1150 = vxor.u32 %v1086, 2147483648
        %v1151 = vxor.u32 %v1087, 2147483648
        %v1152 = vxor.u32 %v1088, 2147483648
        %v1153 = vxor.u32 %v1089, 2147483648
        %v1154 = vxor.u32 %v1090, 2147483648
        %v1155 = vxor.u32 %v1091, 2147483648
        %v1156 = vxor.u32 %v1092, 2147483648
        %v1157 = vxor.u32 %v1093, 2147483648
        %v1158 = vxor.u32 %v1094, 2147483648
        %v1159 = vxor.u32 %v1095, 2147483648
        %v1160 = vxor.u32 %v1096, 2147483648
        %v1161 = vxor.u32 %v1097, 2147483648
        %v1162 = vxor.u32 %v1098, 2147483648
        %v1163 = vxor.u32 %v1099, 2147483648
        %v1164 = vxor.u32 %v1100, 2147483648
        %v1165 = vxor.u32 %v1101, 2147483648
        %v1166 = vxor.u32 %v1102, 2147483648
        %v1167 = vxor.u32 %v1103, 2147483648
        %v1168 = vxor.u32 %v1104, 2147483648
        %v1169 = vxor.u32 %v1105, 2147483648
        %v1170 = vxor.u32 %v1106, 2147483648
        %v1171 = vxor.u32 %v1107, 2147483648
        %v1172 = vxor.u32 %v1108, 2147483648
        %v1173 = vxor.u32 %v1109, 2147483648
        %v1174 = vxor.u32 %v1110, 2147483648
        %v1175 = vxor.u32 %v1111, 2147483648
        %v1176 = vxor.u32 %v1112, 2147483648
        %v1177 = vxor.u32 %v1113, 2147483648
        %v1178 = vxor.u32 %v1114, 2147483648
        %v1179 = vxor.u32 %v1115, 2147483648
        %v1180 = vxor.u32 %v1116, 2147483648
        %v1181 = vxor.u32 %v1117, 2147483648
        %v1182 = vxor.u32 %v1118, 2147483648
        %v1183 = vxor.u32 %v1119, 2147483648
        %v1184 = vxor.u32 %v1120, 2147483648
        %v1185 = vxor.u32 %v1121, 2147483648
        %v1186 = vxor.u32 %v1122, 2147483648
        %v1187 = vxor.u32 %v1123, 2147483648
        %v1188 = vxor.u32 %v1124, 2147483648
        %v1189 = vxor.u32 %v1125, 2147483648
        %v1190 = vxor.u32 %v1126, 2147483648
        %v1191 = vxor.u32 %v1127, 2147483648
        %v1192 = vxor.u32 %v1128, 2147483648
        %v1193 = vxor.u32 %v1129, 2147483648
        %v1194 = vxor.u32 %v1130, 2147483648
        %v1195 = vxor.u32 %v1131, 2147483648
        %v1196 = vxor.u32 %v1132, 2147483648
        %v1197 = vxor.u32 %v1133, 2147483648
        %v1198 = vxor.u32 %v1134, 2147483648
        %v1199 = vxor.u32 %v1135, 2147483648
        %v1200 = vxor.u32 %v1136, 2147483648
        %v1201 = vxor.u32 %v1137, 2147483648
        %v1202 = vxor.u32 %v1138, 2147483648
        %v1203 = vxor.u32 %v1139, 2147483648
        %v1204 = vxor.u32 %v1140, 2147483648
        %v1205 = vxor.u32 %v1141, 2147483648
        %v1206 = vxor.u32 %v1142, 2147483648
        %v1207 = vxor.u32 %v1143, 2147483648
        %v1208 = vxor.u32 %v1144, 2147483648
        %v1209 = vxor.u32 %v1145, 2147483648
        %v1210 = vmul.f32 %v1146, 1.442695
        %v1211 = vpow.pop %v1210
        %v1212 = vmul.f32 %v1147, 1.442695
        %v1213 = vpow.pop %v1212
        %v1214 = vmul.f32 %v1148, 1.442695
        %v1215 = vpow.pop %v1214
        %v1216 = vmul.f32 %v1149, 1.442695
        %v1217 = vpow.pop %v1216
        %v1218 = vmul.f32 %v1150, 1.442695
        %v1219 = vpow.pop %v1218
        %v1220 = vmul.f32 %v1151, 1.442695
        %v1221 = vpow.pop %v1220
        %v1222 = vmul.f32 %v1152, 1.442695
        %v1223 = vpow.pop %v1222
        %v1224 = vmul.f32 %v1153, 1.442695
        %v1225 = vpow.pop %v1224
        %v1226 = vmul.f32 %v1154, 1.442695
        %v1227 = vpow.pop %v1226
        %v1228 = vmul.f32 %v1155, 1.442695
        %v1229 = vpow.pop %v1228
        %v1230 = vmul.f32 %v1156, 1.442695
        %v1231 = vpow.pop %v1230
        %v1232 = vmul.f32 %v1157, 1.442695
        %v1233 = vpow.pop %v1232
        %v1234 = vmul.f32 %v1158, 1.442695
        %v1235 = vpow.pop %v1234
        %v1236 = vmul.f32 %v1159, 1.442695
        %v1237 = vpow.pop %v1236
        %v1238 = vmul.f32 %v1160, 1.442695
        %v1239 = vpow.pop %v1238
        %v1240 = vmul.f32 %v1161, 1.442695
        %v1241 = vpow.pop %v1240
        %v1242 = vmul.f32 %v1162, 1.442695
        %v1243 = vpow.pop %v1242
        %v1244 = vmul.f32 %v1163, 1.442695
        %v1245 = vpow.pop %v1244
        %v1246 = vmul.f32 %v1164, 1.442695
        %v1247 = vpow.pop %v1246
        %v1248 = vmul.f32 %v1165, 1.442695
        %v1249 = vpow.pop %v1248
        %v1250 = vmul.f32 %v1166, 1.442695
        %v1251 = vpow.pop %v1250
        %v1252 = vmul.f32 %v1167, 1.442695
        %v1253 = vpow.pop %v1252
        %v1254 = vmul.f32 %v1168, 1.442695
        %v1255 = vpow.pop %v1254
        %v1256 = vmul.f32 %v1169, 1.442695
        %v1257 = vpow.pop %v1256
        %v1258 = vmul.f32 %v1170, 1.442695
        %v1259 = vpow.pop %v1258
        %v1260 = vmul.f32 %v1171, 1.442695
        %v1261 = vpow.pop %v1260
        %v1262 = vmul.f32 %v1172, 1.442695
        %v1263 = vpow.pop %v1262
        %v1264 = vmul.f32 %v1173, 1.442695
        %v1265 = vpow.pop %v1264
        %v1266 = vmul.f32 %v1174, 1.442695
        %v1267 = vpow.pop %v1266
        %v1268 = vmul.f32 %v1175, 1.442695
        %v1269 = vpow.pop %v1268
        %v1270 = vmul.f32 %v1176, 1.442695
        %v1271 = vpow.pop %v1270
        %v1272 = vmul.f32 %v1177, 1.442695
        %v1273 = vpow.pop %v1272
        %v1274 = vmul.f32 %v1178, 1.442695
        %v1275 = vpow.pop %v1274
        %v1276 = vmul.f32 %v1179, 1.442695
        %v1277 = vpow.pop %v1276
        %v1278 = vmul.f32 %v1180, 1.442695
        %v1279 = vpow.pop %v1278
        %v1280 = vmul.f32 %v1181, 1.442695
        %v1281 = vpow.pop %v1280
        %v1282 = vmul.f32 %v1182, 1.442695
        %v1283 = vpow.pop %v1282
        %v1284 = vmul.f32 %v1183, 1.442695
        %v1285 = vpow.pop %v1284
        %v1286 = vmul.f32 %v1184, 1.442695
        %v1287 = vpow.pop %v1286
        %v1288 = vmul.f32 %v1185, 1.442695
        %v1289 = vpow.pop %v1288
        %v1290 = vmul.f32 %v1186, 1.442695
        %v1291 = vpow.pop %v1290
        %v1292 = vmul.f32 %v1187, 1.442695
        %v1293 = vpow.pop %v1292
        %v1294 = vmul.f32 %v1188, 1.442695
        %v1295 = vpow.pop %v1294
        %v1296 = vmul.f32 %v1189, 1.442695
        %v1297 = vpow.pop %v1296
        %v1298 = vmul.f32 %v1190, 1.442695
        %v1299 = vpow.pop %v1298
        %v1300 = vmul.f32 %v1191, 1.442695
        %v1301 = vpow.pop %v1300
        %v1302 = vmul.f32 %v1192, 1.442695
        %v1303 = vpow.pop %v1302
        %v1304 = vmul.f32 %v1193, 1.442695
        %v1305 = vpow.pop %v1304
        %v1306 = vmul.f32 %v1194, 1.442695
        %v1307 = vpow.pop %v1306
        %v1308 = vmul.f32 %v1195, 1.442695
        %v1309 = vpow.pop %v1308
        %v1310 = vmul.f32 %v1196, 1.442695
        %v1311 = vpow.pop %v1310
        %v1312 = vmul.f32 %v1197, 1.442695
        %v1313 = vpow.pop %v1312
        %v1314 = vmul.f32 %v1198, 1.442695
        %v1315 = vpow.pop %v1314
        %v1316 = vmul.f32 %v1199, 1.442695
        %v1317 = vpow.pop %v1316
        %v1318 = vmul.f32 %v1200, 1.442695
        %v1319 = vpow.pop %v1318
        %v1320 = vmul.f32 %v1201, 1.442695
        %v1321 = vpow.pop %v1320
        %v1322 = vmul.f32 %v1202, 1.442695
        %v1323 = vpow.pop %v1322
        %v1324 = vmul.f32 %v1203, 1.442695
        %v1325 = vpow.pop %v1324
        %v1326 = vmul.f32 %v1204, 1.442695
        %v1327 = vpow.pop %v1326
        %v1328 = vmul.f32 %v1205, 1.442695
        %v1329 = vpow.pop %v1328
        %v1330 = vmul.f32 %v1206, 1.442695
        %v1331 = vpow.pop %v1330
        %v1332 = vmul.f32 %v1207, 1.442695
        %v1333 = vpow.pop %v1332
        %v1334 = vmul.f32 %v1208, 1.442695
        %v1335 = vpow.pop %v1334
        %v1336 = vmul.f32 %v1209, 1.442695
        %v1337 = vpow.pop %v1336
        %v1338 = vadd.f32 %v1211, 1.0
        %v1339 = vadd.f32 %v1213, 1.0
        %v1340 = vadd.f32 %v1215, 1.0
        %v1341 = vadd.f32 %v1217, 1.0
        %v1342 = vadd.f32 %v1219, 1.0
        %v1343 = vadd.f32 %v1221, 1.0
        %v1344 = vadd.f32 %v1223, 1.0
        %v1345 = vadd.f32 %v1225, 1.0
        %v1346 = vadd.f32 %v1227, 1.0
        %v1347 = vadd.f32 %v1229, 1.0
        %v1348 = vadd.f32 %v1231, 1.0
        %v1349 = vadd.f32 %v1233, 1.0
        %v1350 = vadd.f32 %v1235, 1.0
        %v1351 = vadd.f32 %v1237, 1.0
        %v1352 = vadd.f32 %v1239, 1.0
        %v1353 = vadd.f32 %v1241, 1.0
        %v1354 = vadd.f32 %v1243, 1.0
        %v1355 = vadd.f32 %v1245, 1.0
        %v1356 = vadd.f32 %v1247, 1.0
        %v1357 = vadd.f32 %v1249, 1.0
        %v1358 = vadd.f32 %v1251, 1.0
        %v1359 = vadd.f32 %v1253, 1.0
        %v1360 = vadd.f32 %v1255, 1.0
        %v1361 = vadd.f32 %v1257, 1.0
        %v1362 = vadd.f32 %v1259, 1.0
        %v1363 = vadd.f32 %v1261, 1.0
        %v1364 = vadd.f32 %v1263, 1.0
        %v1365 = vadd.f32 %v1265, 1.0
        %v1366 = vadd.f32 %v1267, 1.0
        %v1367 = vadd.f32 %v1269, 1.0
        %v1368 = vadd.f32 %v1271, 1.0
        %v1369 = vadd.f32 %v1273, 1.0
        %v1370 = vadd.f32 %v1275, 1.0
        %v1371 = vadd.f32 %v1277, 1.0
        %v1372 = vadd.f32 %v1279, 1.0
        %v1373 = vadd.f32 %v1281, 1.0
        %v1374 = vadd.f32 %v1283, 1.0
        %v1375 = vadd.f32 %v1285, 1.0
        %v1376 = vadd.f32 %v1287, 1.0
        %v1377 = vadd.f32 %v1289, 1.0
        %v1378 = vadd.f32 %v1291, 1.0
        %v1379 = vadd.f32 %v1293, 1.0
        %v1380 = vadd.f32 %v1295, 1.0
        %v1381 = vadd.f32 %v1297, 1.0
        %v1382 = vadd.f32 %v1299, 1.0
        %v1383 = vadd.f32 %v1301, 1.0
        %v1384 = vadd.f32 %v1303, 1.0
        %v1385 = vadd.f32 %v1305, 1.0
        %v1386 = vadd.f32 %v1307, 1.0
        %v1387 = vadd.f32 %v1309, 1.0
        %v1388 = vadd.f32 %v1311, 1.0
        %v1389 = vadd.f32 %v1313, 1.0
        %v1390 = vadd.f32 %v1315, 1.0
        %v1391 = vadd.f32 %v1317, 1.0
        %v1392 = vadd.f32 %v1319, 1.0
        %v1393 = vadd.f32 %v1321, 1.0
        %v1394 = vadd.f32 %v1323, 1.0
        %v1395 = vadd.f32 %v1325, 1.0
        %v1396 = vadd.f32 %v1327, 1.0
        %v1397 = vadd.f32 %v1329, 1.0
        %v1398 = vadd.f32 %v1331, 1.0
        %v1399 = vadd.f32 %v1333, 1.0
        %v1400 = vadd.f32 %v1335, 1.0
        %v1401 = vadd.f32 %v1337, 1.0
        %v1402 = vrcp.pop %v1338
        %v1403 = vmul.f32 1.0, %v1402
        %v1404 = vrcp.pop %v1339
        %v1405 = vmul.f32 1.0, %v1404
        %v1406 = vrcp.pop %v1340
        %v1407 = vmul.f32 1.0, %v1406
        %v1408 = vrcp.pop %v1341
        %v1409 = vmul.f32 1.0, %v1408
        %v1410 = vrcp.pop %v1342
        %v1411 = vmul.f32 1.0, %v1410
        %v1412 = vrcp.pop %v1343
        %v1413 = vmul.f32 1.0, %v1412
        %v1414 = vrcp.pop %v1344
        %v1415 = vmul.f32 1.0, %v1414
        %v1416 = vrcp.pop %v1345
        %v1417 = vmul.f32 1.0, %v1416
        %v1418 = vrcp.pop %v1346
        %v1419 = vmul.f32 1.0, %v1418
        %v1420 = vrcp.pop %v1347
        %v1421 = vmul.f32 1.0, %v1420
        %v1422 = vrcp.pop %v1348
        %v1423 = vmul.f32 1.0, %v1422
        %v1424 = vrcp.pop %v1349
        %v1425 = vmul.f32 1.0, %v1424
        %v1426 = vrcp.pop %v1350
        %v1427 = vmul.f32 1.0, %v1426
        %v1428 = vrcp.pop %v1351
        %v1429 = vmul.f32 1.0, %v1428
        %v1430 = vrcp.pop %v1352
        %v1431 = vmul.f32 1.0, %v1430
        %v1432 = vrcp.pop %v1353
        %v1433 = vmul.f32 1.0, %v1432
        %v1434 = vrcp.pop %v1354
        %v1435 = vmul.f32 1.0, %v1434
        %v1436 = vrcp.pop %v1355
        %v1437 = vmul.f32 1.0, %v1436
        %v1438 = vrcp.pop %v1356
        %v1439 = vmul.f32 1.0, %v1438
        %v1440 = vrcp.pop %v1357
        %v1441 = vmul.f32 1.0, %v1440
        %v1442 = vrcp.pop %v1358
        %v1443 = vmul.f32 1.0, %v1442
        %v1444 = vrcp.pop %v1359
        %v1445 = vmul.f32 1.0, %v1444
        %v1446 = vrcp.pop %v1360
        %v1447 = vmul.f32 1.0, %v1446
        %v1448 = vrcp.pop %v1361
        %v1449 = vmul.f32 1.0, %v1448
        %v1450 = vrcp.pop %v1362
        %v1451 = vmul.f32 1.0, %v1450
        %v1452 = vrcp.pop %v1363
        %v1453 = vmul.f32 1.0, %v1452
        %v1454 = vrcp.pop %v1364
        %v1455 = vmul.f32 1.0, %v1454
        %v1456 = vrcp.pop %v1365
        %v1457 = vmul.f32 1.0, %v1456
        %v1458 = vrcp.pop %v1366
        %v1459 = vmul.f32 1.0, %v1458
        %v1460 = vrcp.pop %v1367
        %v1461 = vmul.f32 1.0, %v1460
        %v1462 = vrcp.pop %v1368
        %v1463 = vmul.f32 1.0, %v1462
        %v1464 = vrcp.pop %v1369
        %v1465 = vmul.f32 1.0, %v1464
        %v1466 = vrcp.pop %v1370
        %v1467 = vmul.f32 1.0, %v1466
        %v1468 = vrcp.pop %v1371
        %v1469 = vmul.f32 1.0, %v1468
        %v1470 = vrcp.pop %v1372
        %v1471 = vmul.f32 1.0, %v1470
        %v1472 = vrcp.pop %v1373
        %v1473 = vmul.f32 1.0, %v1472
        %v1474 = vrcp.pop %v1374
        %v1475 = vmul.f32 1.0, %v1474
        %v1476 = vrcp.pop %v1375
        %v1477 = vmul.f32 1.0, %v1476
        %v1478 = vrcp.pop %v1376
        %v1479 = vmul.f32 1.0, %v1478
        %v1480 = vrcp.pop %v1377
        %v1481 = vmul.f32 1.0, %v1480
        %v1482 = vrcp.pop %v1378
        %v1483 = vmul.f32 1.0, %v1482
        %v1484 = vrcp.pop %v1379
        %v1485 = vmul.f32 1.0, %v1484
        %v1486 = vrcp.pop %v1380
        %v1487 = vmul.f32 1.0, %v1486
        %v1488 = vrcp.pop %v1381
        %v1489 = vmul.f32 1.0, %v1488
        %v1490 = vrcp.pop %v1382
        %v1491 = vmul.f32 1.0, %v1490
        %v1492 = vrcp.pop %v1383
        %v1493 = vmul.f32 1.0, %v1492
        %v1494 = vrcp.pop %v1384
        %v1495 = vmul.f32 1.0, %v1494
        %v1496 = vrcp.pop %v1385
        %v1497 = vmul.f32 1.0, %v1496
        %v1498 = vrcp.pop %v1386
        %v1499 = vmul.f32 1.0, %v1498
        %v1500 = vrcp.pop %v1387
        %v1501 = vmul.f32 1.0, %v1500
        %v1502 = vrcp.pop %v1388
        %v1503 = vmul.f32 1.0, %v1502
        %v1504 = vrcp.pop %v1389
        %v1505 = vmul.f32 1.0, %v1504
        %v1506 = vrcp.pop %v1390
        %v1507 = vmul.f32 1.0, %v1506
        %v1508 = vrcp.pop %v1391
        %v1509 = vmul.f32 1.0, %v1508
        %v1510 = vrcp.pop %v1392
        %v1511 = vmul.f32 1.0, %v1510
        %v1512 = vrcp.pop %v1393
        %v1513 = vmul.f32 1.0, %v1512
        %v1514 = vrcp.pop %v1394
        %v1515 = vmul.f32 1.0, %v1514
        %v1516 = vrcp.pop %v1395
        %v1517 = vmul.f32 1.0, %v1516
        %v1518 = vrcp.pop %v1396
        %v1519 = vmul.f32 1.0, %v1518
        %v1520 = vrcp.pop %v1397
        %v1521 = vmul.f32 1.0, %v1520
        %v1522 = vrcp.pop %v1398
        %v1523 = vmul.f32 1.0, %v1522
        %v1524 = vrcp.pop %v1399
        %v1525 = vmul.f32 1.0, %v1524
        %v1526 = vrcp.pop %v1400
        %v1527 = vmul.f32 1.0, %v1526
        %v1528 = vrcp.pop %v1401
        %v1529 = vmul.f32 1.0, %v1528
        %v1530 = vmul.f32 %v1082, %v1403
        %v1531 = vmul.f32 %v1083, %v1405
        %v1532 = vmul.f32 %v1084, %v1407
        %v1533 = vmul.f32 %v1085, %v1409
        %v1534 = vmul.f32 %v1086, %v1411
        %v1535 = vmul.f32 %v1087, %v1413
        %v1536 = vmul.f32 %v1088, %v1415
        %v1537 = vmul.f32 %v1089, %v1417
        %v1538 = vmul.f32 %v1090, %v1419
        %v1539 = vmul.f32 %v1091, %v1421
        %v1540 = vmul.f32 %v1092, %v1423
        %v1541 = vmul.f32 %v1093, %v1425
        %v1542 = vmul.f32 %v1094, %v1427
        %v1543 = vmul.f32 %v1095, %v1429
        %v1544 = vmul.f32 %v1096, %v1431
        %v1545 = vmul.f32 %v1097, %v1433
        %v1546 = vmul.f32 %v1098, %v1435
        %v1547 = vmul.f32 %v1099, %v1437
        %v1548 = vmul.f32 %v1100, %v1439
        %v1549 = vmul.f32 %v1101, %v1441
        %v1550 = vmul.f32 %v1102, %v1443
        %v1551 = vmul.f32 %v1103, %v1445
        %v1552 = vmul.f32 %v1104, %v1447
        %v1553 = vmul.f32 %v1105, %v1449
        %v1554 = vmul.f32 %v1106, %v1451
        %v1555 = vmul.f32 %v1107, %v1453
        %v1556 = vmul.f32 %v1108, %v1455
        %v1557 = vmul.f32 %v1109, %v1457
        %v1558 = vmul.f32 %v1110, %v1459
        %v1559 = vmul.f32 %v1111, %v1461
        %v1560 = vmul.f32 %v1112, %v1463
        %v1561 = vmul.f32 %v1113, %v1465
        %v1562 = vmul.f32 %v1114, %v1467
        %v1563 = vmul.f32 %v1115, %v1469
        %v1564 = vmul.f32 %v1116, %v1471
        %v1565 = vmul.f32 %v1117, %v1473
        %v1566 = vmul.f32 %v1118, %v1475
        %v1567 = vmul.f32 %v1119, %v1477
        %v1568 = vmul.f32 %v1120, %v1479
        %v1569 = vmul.f32 %v1121, %v1481
        %v1570 = vmul.f32 %v1122, %v1483
        %v1571 = vmul.f32 %v1123, %v1485
        %v1572 = vmul.f32 %v1124, %v1487
        %v1573 = vmul.f32 %v1125, %v1489
        %v1574 = vmul.f32 %v1126, %v1491
        %v1575 = vmul.f32 %v1127, %v1493
        %v1576 = vmul.f32 %v1128, %v1495
        %v1577 = vmul.f32 %v1129, %v1497
        %v1578 = vmul.f32 %v1130, %v1499
        %v1579 = vmul.f32 %v1131, %v1501
        %v1580 = vmul.f32 %v1132, %v1503
        %v1581 = vmul.f32 %v1133, %v1505
        %v1582 = vmul.f32 %v1134, %v1507
        %v1583 = vmul.f32 %v1135, %v1509
        %v1584 = vmul.f32 %v1136, %v1511
        %v1585 = vmul.f32 %v1137, %v1513
        %v1586 = vmul.f32 %v1138, %v1515
        %v1587 = vmul.f32 %v1139, %v1517
        %v1588 = vmul.f32 %v1140, %v1519
        %v1589 = vmul.f32 %v1141, %v1521
        %v1590 = vmul.f32 %v1142, %v1523
        %v1591 = vmul.f32 %v1143, %v1525
        %v1592 = vmul.f32 %v1144, %v1527
        %v1593 = vmul.f32 %v1145, %v1529
        %v1594 = vpack.c.bf16 %v1532, %v1530
        %v1595 = vpack.c.bf16 %v1533, %v1531
        %v1596 = vpack.c.bf16 %v1536, %v1534
        %v1597 = vpack.c.bf16 %v1537, %v1535
        %v1598 = vpack.c.bf16 %v1540, %v1538
        %v1599 = vpack.c.bf16 %v1541, %v1539
        %v1600 = vpack.c.bf16 %v1544, %v1542
        %v1601 = vpack.c.bf16 %v1545, %v1543
        %v1602 = vpack.c.bf16 %v1548, %v1546
        %v1603 = vpack.c.bf16 %v1549, %v1547
        %v1604 = vpack.c.bf16 %v1552, %v1550
        %v1605 = vpack.c.bf16 %v1553, %v1551
        %v1606 = vpack.c.bf16 %v1556, %v1554
        %v1607 = vpack.c.bf16 %v1557, %v1555
        %v1608 = vpack.c.bf16 %v1560, %v1558
        %v1609 = vpack.c.bf16 %v1561, %v1559
        %v1610 = vpack.c.bf16 %v1564, %v1562
        %v1611 = vpack.c.bf16 %v1565, %v1563
        %v1612 = vpack.c.bf16 %v1568, %v1566
        %v1613 = vpack.c.bf16 %v1569, %v1567
        %v1614 = vpack.c.bf16 %v1572, %v1570
        %v1615 = vpack.c.bf16 %v1573, %v1571
        %v1616 = vpack.c.bf16 %v1576, %v1574
        %v1617 = vpack.c.bf16 %v1577, %v1575
        %v1618 = vpack.c.bf16 %v1580, %v1578
        %v1619 = vpack.c.bf16 %v1581, %v1579
        %v1620 = vpack.c.bf16 %v1584, %v1582
        %v1621 = vpack.c.bf16 %v1585, %v1583
        %v1622 = vpack.c.bf16 %v1588, %v1586
        %v1623 = vpack.c.bf16 %v1589, %v1587
        %v1624 = vpack.c.bf16 %v1592, %v1590
        %v1625 = vpack.c.bf16 %v1593, %v1591
        %v1626 = vld [vmem:[%s6] sm:$0xf]
        %v1627 = vld [vmem:[%s6 + $0x4] sm:$0xf]
        %v1628 = vld [vmem:[%s6 + $0x8] sm:$0xf]
        %v1629 = vld [vmem:[%s6 + $0xc] sm:$0xf]
        %v1630 = vld [vmem:[%s6 + $0x10] sm:$0xf]
        %v1631 = vld [vmem:[%s6 + $0x14] sm:$0xf]
        %v1632 = vld [vmem:[%s6 + $0x18] sm:$0xf]
        %v1633 = vld [vmem:[%s6 + $0x1c] sm:$0xf]
        %v1634 = vld [vmem:[%s6 + $0x20] sm:$0xf]
        %v1635 = vld [vmem:[%s6 + $0x24] sm:$0xf]
        %v1636 = vld [vmem:[%s6 + $0x28] sm:$0xf]
        %v1637 = vld [vmem:[%s6 + $0x2c] sm:$0xf]
        %v1638 = vld [vmem:[%s6 + $0x30] sm:$0xf]
        %v1639 = vld [vmem:[%s6 + $0x34] sm:$0xf]
        %v1640 = vld [vmem:[%s6 + $0x38] sm:$0xf]
        %v1641 = vld [vmem:[%s6 + $0x3c] sm:$0xf]
        %v1642 = vld [vmem:[%s6 + $0x40] sm:$0xf]
        %v1643 = vld [vmem:[%s6 + $0x44] sm:$0xf]
        %v1644 = vld [vmem:[%s6 + $0x48] sm:$0xf]
        %v1645 = vld [vmem:[%s6 + $0x4c] sm:$0xf]
        %v1646 = vld [vmem:[%s6 + $0x50] sm:$0xf]
        %v1647 = vld [vmem:[%s6 + $0x54] sm:$0xf]
        %v1648 = vld [vmem:[%s6 + $0x58] sm:$0xf]
        %v1649 = vld [vmem:[%s6 + $0x5c] sm:$0xf]
        %v1650 = vld [vmem:[%s6 + $0x60] sm:$0xf]
        %v1651 = vld [vmem:[%s6 + $0x64] sm:$0xf]
        %v1652 = vld [vmem:[%s6 + $0x68] sm:$0xf]
        %v1653 = vld [vmem:[%s6 + $0x6c] sm:$0xf]
        %v1654 = vld [vmem:[%s6 + $0x70] sm:$0xf]
        %v1655 = vld [vmem:[%s6 + $0x74] sm:$0xf]
        %v1656 = vld [vmem:[%s6 + $0x78] sm:$0xf]
        %v1657 = vld [vmem:[%s6 + $0x7c] sm:$0xf]
        %v1690 = vunpack.c.l.b16 %v1626
        %v1691 = vunpack.c.l.b16 %v1627
        %v1692 = vunpack.c.l.b16 %v1628
        %v1693 = vunpack.c.l.b16 %v1629
        %v1694 = vunpack.c.l.b16 %v1630
        %v1695 = vunpack.c.l.b16 %v1631
        %v1696 = vunpack.c.l.b16 %v1632
        %v1697 = vunpack.c.l.b16 %v1633
        %v1698 = vunpack.c.l.b16 %v1634
        %v1699 = vunpack.c.l.b16 %v1635
        %v1700 = vunpack.c.l.b16 %v1636
        %v1701 = vunpack.c.l.b16 %v1637
        %v1702 = vunpack.c.l.b16 %v1638
        %v1703 = vunpack.c.l.b16 %v1639
        %v1704 = vunpack.c.l.b16 %v1640
        %v1705 = vunpack.c.l.b16 %v1641
        %v1706 = vunpack.c.l.b16 %v1642
        %v1707 = vunpack.c.l.b16 %v1643
        %v1708 = vunpack.c.l.b16 %v1644
        %v1709 = vunpack.c.l.b16 %v1645
        %v1710 = vunpack.c.l.b16 %v1646
        %v1711 = vunpack.c.l.b16 %v1647
        %v1712 = vunpack.c.l.b16 %v1648
        %v1713 = vunpack.c.l.b16 %v1649
        %v1714 = vunpack.c.l.b16 %v1650
        %v1715 = vunpack.c.l.b16 %v1651
        %v1716 = vunpack.c.l.b16 %v1652
        %v1717 = vunpack.c.l.b16 %v1653
        %v1718 = vunpack.c.l.b16 %v1654
        %v1719 = vunpack.c.l.b16 %v1655
        %v1720 = vunpack.c.l.b16 %v1656
        %v1721 = vunpack.c.l.b16 %v1657
        %v1722 = vpack.c.b16 %v1691, %v1690
        %v1723 = vpack.c.b16 %v1693, %v1692
        %v1724 = vpack.c.b16 %v1695, %v1694
        %v1725 = vpack.c.b16 %v1697, %v1696
        %v1726 = vpack.c.b16 %v1699, %v1698
        %v1727 = vpack.c.b16 %v1701, %v1700
        %v1728 = vpack.c.b16 %v1703, %v1702
        %v1729 = vpack.c.b16 %v1705, %v1704
        %v1730 = vpack.c.b16 %v1707, %v1706
        %v1731 = vpack.c.b16 %v1709, %v1708
        %v1732 = vpack.c.b16 %v1711, %v1710
        %v1733 = vpack.c.b16 %v1713, %v1712
        %v1734 = vpack.c.b16 %v1715, %v1714
        %v1735 = vpack.c.b16 %v1717, %v1716
        %v1736 = vpack.c.b16 %v1719, %v1718
        %v1737 = vpack.c.b16 %v1721, %v1720
        %1754 = vmatprep.subr.bf16.mxu0 0
        %1755 = vmatpush1.bf16.msra.mxu0 %v1729
        %1756 = vmatprep.subr.bf16.mxu0 0
        %1757 = vmatpush1.bf16.msra.mxu0 %v1728
        %1758 = vmatprep.subr.bf16.mxu0 0
        %1759 = vmatpush1.bf16.msra.mxu0 %v1727
        %1760 = vmatprep.subr.bf16.mxu0 0
        %1761 = vmatpush1.bf16.msra.mxu0 %v1726
        %1762 = vmatprep.subr.bf16.mxu0 0
        %1763 = vmatpush1.bf16.msra.mxu0 %v1725
        %1764 = vmatprep.subr.bf16.mxu0 0
        %1765 = vmatpush1.bf16.msra.mxu0 %v1724
        %1766 = vmatprep.subr.bf16.mxu0 0
        %1767 = vmatpush1.bf16.msra.mxu0 %v1723
        %1768 = vmatprep.subr.bf16.mxu0 0
        %1769 = vmatpush1.bf16.msra.mxu0 %v1722
        %1770 = vmatprep.subr.bf16.mxu0 0
        %1771 = vmatpush2.bf16.msra.mxu0 %v1737
        %1772 = vmatprep.subr.bf16.mxu0 0
        %1773 = vmatpush2.bf16.msra.mxu0 %v1736
        %1774 = vmatprep.subr.bf16.mxu0 0
        %1775 = vmatpush2.bf16.msra.mxu0 %v1735
        %1776 = vmatprep.subr.bf16.mxu0 0
        %1777 = vmatpush2.bf16.msra.mxu0 %v1734
        %1778 = vmatprep.subr.bf16.mxu0 0
        %1779 = vmatpush2.bf16.msra.mxu0 %v1733
        %1780 = vmatprep.subr.bf16.mxu0 0
        %1781 = vmatpush2.bf16.msra.mxu0 %v1732
        %1782 = vmatprep.subr.bf16.mxu0 0
        %1783 = vmatpush2.bf16.msra.mxu0 %v1731
        %1784 = vmatprep.subr.bf16.mxu0 0
        %1785 = vmatpush2.bf16.msra.mxu0 %v1730
        %1786 = vmatprep.mubr.bf16.mxu0 %v1595
        %1787 = vmatmul.mubr.bf16.gmra.mxu0 %v1594
        %v1788 = vpop.f32.mrf.mxu0
        %v1789 = vadd.f32 0.0, %v1788
        %v1790 = vpop.f32.mrf.mxu0
        %v1791 = vpop.f32.mrf.mxu0
        %v1792 = vadd.f32 0.0, %v1791
        %v1793 = vpop.f32.mrf.mxu0
        %1794 = vmatprep.mubr.bf16.mxu0 %v1597
        %1795 = vmatmul.mubr.bf16.gmra.mxu0 %v1596
        %v1796 = vpop.f32.mrf.mxu0
        %v1797 = vadd.f32 0.0, %v1796
        %v1798 = vpop.f32.mrf.mxu0
        %v1799 = vpop.f32.mrf.mxu0
        %v1800 = vadd.f32 0.0, %v1799
        %v1801 = vpop.f32.mrf.mxu0
        %1802 = vmatprep.mubr.bf16.mxu0 %v1599
        %1803 = vmatmul.mubr.bf16.gmra.mxu0 %v1598
        %v1804 = vpop.f32.mrf.mxu0
        %v1805 = vadd.f32 0.0, %v1804
        %v1806 = vpop.f32.mrf.mxu0
        %v1807 = vpop.f32.mrf.mxu0
        %v1808 = vadd.f32 0.0, %v1807
        %v1809 = vpop.f32.mrf.mxu0
        %1810 = vmatprep.mubr.bf16.mxu0 %v1601
        %1811 = vmatmul.mubr.bf16.gmra.mxu0 %v1600
        %v1812 = vpop.f32.mrf.mxu0
        %v1813 = vadd.f32 0.0, %v1812
        %v1814 = vpop.f32.mrf.mxu0
        %v1815 = vpop.f32.mrf.mxu0
        %v1816 = vadd.f32 0.0, %v1815
        %v1817 = vpop.f32.mrf.mxu0
        %1818 = vmatprep.mubr.bf16.mxu0 %v1603
        %1819 = vmatmul.mubr.bf16.gmra.mxu0 %v1602
        %v1820 = vpop.f32.mrf.mxu0
        %v1821 = vadd.f32 0.0, %v1820
        %v1822 = vpop.f32.mrf.mxu0
        %v1823 = vpop.f32.mrf.mxu0
        %v1824 = vadd.f32 0.0, %v1823
        %v1825 = vpop.f32.mrf.mxu0
        %1826 = vmatprep.mubr.bf16.mxu0 %v1605
        %1827 = vmatmul.mubr.bf16.gmra.mxu0 %v1604
        %v1828 = vpop.f32.mrf.mxu0
        %v1829 = vadd.f32 0.0, %v1828
        %v1830 = vpop.f32.mrf.mxu0
        %v1831 = vpop.f32.mrf.mxu0
        %v1832 = vadd.f32 0.0, %v1831
        %v1833 = vpop.f32.mrf.mxu0
        %1834 = vmatprep.mubr.bf16.mxu0 %v1607
        %1835 = vmatmul.mubr.bf16.gmra.mxu0 %v1606
        %v1836 = vpop.f32.mrf.mxu0
        %v1837 = vadd.f32 0.0, %v1836
        %v1838 = vpop.f32.mrf.mxu0
        %v1839 = vpop.f32.mrf.mxu0
        %v1840 = vadd.f32 0.0, %v1839
        %v1841 = vpop.f32.mrf.mxu0
        %1842 = vmatprep.mubr.bf16.mxu0 %v1609
        %1843 = vmatmul.mubr.bf16.gmra.mxu0 %v1608
        %v1844 = vpop.f32.mrf.mxu0
        %v1845 = vadd.f32 0.0, %v1844
        %v1846 = vpop.f32.mrf.mxu0
        %v1847 = vpop.f32.mrf.mxu0
        %v1848 = vadd.f32 0.0, %v1847
        %v1849 = vpop.f32.mrf.mxu0
        %1850 = vmatprep.mubr.bf16.mxu0 %v1611
        %1851 = vmatmul.mubr.bf16.gmra.mxu0 %v1610
        %v1852 = vpop.f32.mrf.mxu0
        %v1853 = vadd.f32 0.0, %v1852
        %v1854 = vpop.f32.mrf.mxu0
        %v1855 = vpop.f32.mrf.mxu0
        %v1856 = vadd.f32 0.0, %v1855
        %v1857 = vpop.f32.mrf.mxu0
        %1858 = vmatprep.mubr.bf16.mxu0 %v1613
        %1859 = vmatmul.mubr.bf16.gmra.mxu0 %v1612
        %v1860 = vpop.f32.mrf.mxu0
        %v1861 = vadd.f32 0.0, %v1860
        %v1862 = vpop.f32.mrf.mxu0
        %v1863 = vpop.f32.mrf.mxu0
        %v1864 = vadd.f32 0.0, %v1863
        %v1865 = vpop.f32.mrf.mxu0
        %1866 = vmatprep.mubr.bf16.mxu0 %v1615
        %1867 = vmatmul.mubr.bf16.gmra.mxu0 %v1614
        %v1868 = vpop.f32.mrf.mxu0
        %v1869 = vadd.f32 0.0, %v1868
        %v1870 = vpop.f32.mrf.mxu0
        %v1871 = vpop.f32.mrf.mxu0
        %v1872 = vadd.f32 0.0, %v1871
        %v1873 = vpop.f32.mrf.mxu0
        %1874 = vmatprep.mubr.bf16.mxu0 %v1617
        %1875 = vmatmul.mubr.bf16.gmra.mxu0 %v1616
        %v1876 = vpop.f32.mrf.mxu0
        %v1877 = vadd.f32 0.0, %v1876
        %v1878 = vpop.f32.mrf.mxu0
        %v1879 = vpop.f32.mrf.mxu0
        %v1880 = vadd.f32 0.0, %v1879
        %v1881 = vpop.f32.mrf.mxu0
        %1882 = vmatprep.mubr.bf16.mxu0 %v1619
        %1883 = vmatmul.mubr.bf16.gmra.mxu0 %v1618
        %v1884 = vpop.f32.mrf.mxu0
        %v1885 = vadd.f32 0.0, %v1884
        %v1886 = vpop.f32.mrf.mxu0
        %v1887 = vpop.f32.mrf.mxu0
        %v1888 = vadd.f32 0.0, %v1887
        %v1889 = vpop.f32.mrf.mxu0
        %1890 = vmatprep.mubr.bf16.mxu0 %v1621
        %1891 = vmatmul.mubr.bf16.gmra.mxu0 %v1620
        %v1892 = vpop.f32.mrf.mxu0
        %v1893 = vadd.f32 0.0, %v1892
        %v1894 = vpop.f32.mrf.mxu0
        %v1895 = vpop.f32.mrf.mxu0
        %v1896 = vadd.f32 0.0, %v1895
        %v1897 = vpop.f32.mrf.mxu0
        %1898 = vmatprep.mubr.bf16.mxu0 %v1623
        %1899 = vmatmul.mubr.bf16.gmra.mxu0 %v1622
        %v1900 = vpop.f32.mrf.mxu0
        %v1901 = vadd.f32 0.0, %v1900
        %v1902 = vpop.f32.mrf.mxu0
        %v1903 = vpop.f32.mrf.mxu0
        %v1904 = vadd.f32 0.0, %v1903
        %v1905 = vpop.f32.mrf.mxu0
        %1906 = vmatprep.mubr.bf16.mxu0 %v1625
        %1907 = vmatmul.mubr.bf16.gmra.mxu0 %v1624
        %v1908 = vpop.f32.mrf.mxu0
        %v1909 = vadd.f32 0.0, %v1908
        %v1910 = vpop.f32.mrf.mxu0
        %v1911 = vpop.f32.mrf.mxu0
        %v1912 = vadd.f32 0.0, %v1911
        %v1913 = vpop.f32.mrf.mxu0
        %1914 = vdwg.mxu0
        %v1915 = vld [vmem:[%s7] sm:$0x1]
        %v1917 = vlaneseq
        %v1918 = vshrl.u32 %v1917, 7
        %v1919 = vsub.s32 0, %v1918
        %v1920 = vrot.slane %v1915, %v1919
        %v1922 = vadd.f32 %v1789, %v1920
        %v1923 = vadd.f32 %v1792, %v1920
        %v1924 = vadd.f32 %v1797, %v1920
        %v1925 = vadd.f32 %v1800, %v1920
        %v1926 = vadd.f32 %v1805, %v1920
        %v1927 = vadd.f32 %v1808, %v1920
        %v1928 = vadd.f32 %v1813, %v1920
        %v1929 = vadd.f32 %v1816, %v1920
        %v1930 = vadd.f32 %v1821, %v1920
        %v1931 = vadd.f32 %v1824, %v1920
        %v1932 = vadd.f32 %v1829, %v1920
        %v1933 = vadd.f32 %v1832, %v1920
        %v1934 = vadd.f32 %v1837, %v1920
        %v1935 = vadd.f32 %v1840, %v1920
        %v1936 = vadd.f32 %v1845, %v1920
        %v1937 = vadd.f32 %v1848, %v1920
        %v1938 = vadd.f32 %v1853, %v1920
        %v1939 = vadd.f32 %v1856, %v1920
        %v1940 = vadd.f32 %v1861, %v1920
        %v1941 = vadd.f32 %v1864, %v1920
        %v1942 = vadd.f32 %v1869, %v1920
        %v1943 = vadd.f32 %v1872, %v1920
        %v1944 = vadd.f32 %v1877, %v1920
        %v1945 = vadd.f32 %v1880, %v1920
        %v1946 = vadd.f32 %v1885, %v1920
        %v1947 = vadd.f32 %v1888, %v1920
        %v1948 = vadd.f32 %v1893, %v1920
        %v1949 = vadd.f32 %v1896, %v1920
        %v1950 = vadd.f32 %v1901, %v1920
        %v1951 = vadd.f32 %v1904, %v1920
        %v1952 = vadd.f32 %v1909, %v1920
        %v1953 = vadd.f32 %v1912, %v1920
        %v1954 = vxor.u32 %v1922, 2147483648
        %v1955 = vxor.u32 %v1923, 2147483648
        %v1956 = vxor.u32 %v1924, 2147483648
        %v1957 = vxor.u32 %v1925, 2147483648
        %v1958 = vxor.u32 %v1926, 2147483648
        %v1959 = vxor.u32 %v1927, 2147483648
        %v1960 = vxor.u32 %v1928, 2147483648
        %v1961 = vxor.u32 %v1929, 2147483648
        %v1962 = vxor.u32 %v1930, 2147483648
        %v1963 = vxor.u32 %v1931, 2147483648
        %v1964 = vxor.u32 %v1932, 2147483648
        %v1965 = vxor.u32 %v1933, 2147483648
        %v1966 = vxor.u32 %v1934, 2147483648
        %v1967 = vxor.u32 %v1935, 2147483648
        %v1968 = vxor.u32 %v1936, 2147483648
        %v1969 = vxor.u32 %v1937, 2147483648
        %v1970 = vxor.u32 %v1938, 2147483648
        %v1971 = vxor.u32 %v1939, 2147483648
        %v1972 = vxor.u32 %v1940, 2147483648
        %v1973 = vxor.u32 %v1941, 2147483648
        %v1974 = vxor.u32 %v1942, 2147483648
        %v1975 = vxor.u32 %v1943, 2147483648
        %v1976 = vxor.u32 %v1944, 2147483648
        %v1977 = vxor.u32 %v1945, 2147483648
        %v1978 = vxor.u32 %v1946, 2147483648
        %v1979 = vxor.u32 %v1947, 2147483648
        %v1980 = vxor.u32 %v1948, 2147483648
        %v1981 = vxor.u32 %v1949, 2147483648
        %v1982 = vxor.u32 %v1950, 2147483648
        %v1983 = vxor.u32 %v1951, 2147483648
        %v1984 = vxor.u32 %v1952, 2147483648
        %v1985 = vxor.u32 %v1953, 2147483648
        %v1986 = vmul.f32 %v1954, 1.442695
        %v1987 = vpow.pop %v1986
        %v1988 = vmul.f32 %v1955, 1.442695
        %v1989 = vpow.pop %v1988
        %v1990 = vmul.f32 %v1956, 1.442695
        %v1991 = vpow.pop %v1990
        %v1992 = vmul.f32 %v1957, 1.442695
        %v1993 = vpow.pop %v1992
        %v1994 = vmul.f32 %v1958, 1.442695
        %v1995 = vpow.pop %v1994
        %v1996 = vmul.f32 %v1959, 1.442695
        %v1997 = vpow.pop %v1996
        %v1998 = vmul.f32 %v1960, 1.442695
        %v1999 = vpow.pop %v1998
        %v2000 = vmul.f32 %v1961, 1.442695
        %v2001 = vpow.pop %v2000
        %v2002 = vmul.f32 %v1962, 1.442695
        %v2003 = vpow.pop %v2002
        %v2004 = vmul.f32 %v1963, 1.442695
        %v2005 = vpow.pop %v2004
        %v2006 = vmul.f32 %v1964, 1.442695
        %v2007 = vpow.pop %v2006
        %v2008 = vmul.f32 %v1965, 1.442695
        %v2009 = vpow.pop %v2008
        %v2010 = vmul.f32 %v1966, 1.442695
        %v2011 = vpow.pop %v2010
        %v2012 = vmul.f32 %v1967, 1.442695
        %v2013 = vpow.pop %v2012
        %v2014 = vmul.f32 %v1968, 1.442695
        %v2015 = vpow.pop %v2014
        %v2016 = vmul.f32 %v1969, 1.442695
        %v2017 = vpow.pop %v2016
        %v2018 = vmul.f32 %v1970, 1.442695
        %v2019 = vpow.pop %v2018
        %v2020 = vmul.f32 %v1971, 1.442695
        %v2021 = vpow.pop %v2020
        %v2022 = vmul.f32 %v1972, 1.442695
        %v2023 = vpow.pop %v2022
        %v2024 = vmul.f32 %v1973, 1.442695
        %v2025 = vpow.pop %v2024
        %v2026 = vmul.f32 %v1974, 1.442695
        %v2027 = vpow.pop %v2026
        %v2028 = vmul.f32 %v1975, 1.442695
        %v2029 = vpow.pop %v2028
        %v2030 = vmul.f32 %v1976, 1.442695
        %v2031 = vpow.pop %v2030
        %v2032 = vmul.f32 %v1977, 1.442695
        %v2033 = vpow.pop %v2032
        %v2034 = vmul.f32 %v1978, 1.442695
        %v2035 = vpow.pop %v2034
        %v2036 = vmul.f32 %v1979, 1.442695
        %v2037 = vpow.pop %v2036
        %v2038 = vmul.f32 %v1980, 1.442695
        %v2039 = vpow.pop %v2038
        %v2040 = vmul.f32 %v1981, 1.442695
        %v2041 = vpow.pop %v2040
        %v2042 = vmul.f32 %v1982, 1.442695
        %v2043 = vpow.pop %v2042
        %v2044 = vmul.f32 %v1983, 1.442695
        %v2045 = vpow.pop %v2044
        %v2046 = vmul.f32 %v1984, 1.442695
        %v2047 = vpow.pop %v2046
        %v2048 = vmul.f32 %v1985, 1.442695
        %v2049 = vpow.pop %v2048
        %v2050 = vadd.f32 %v1987, 1.0
        %v2051 = vadd.f32 %v1989, 1.0
        %v2052 = vadd.f32 %v1991, 1.0
        %v2053 = vadd.f32 %v1993, 1.0
        %v2054 = vadd.f32 %v1995, 1.0
        %v2055 = vadd.f32 %v1997, 1.0
        %v2056 = vadd.f32 %v1999, 1.0
        %v2057 = vadd.f32 %v2001, 1.0
        %v2058 = vadd.f32 %v2003, 1.0
        %v2059 = vadd.f32 %v2005, 1.0
        %v2060 = vadd.f32 %v2007, 1.0
        %v2061 = vadd.f32 %v2009, 1.0
        %v2062 = vadd.f32 %v2011, 1.0
        %v2063 = vadd.f32 %v2013, 1.0
        %v2064 = vadd.f32 %v2015, 1.0
        %v2065 = vadd.f32 %v2017, 1.0
        %v2066 = vadd.f32 %v2019, 1.0
        %v2067 = vadd.f32 %v2021, 1.0
        %v2068 = vadd.f32 %v2023, 1.0
        %v2069 = vadd.f32 %v2025, 1.0
        %v2070 = vadd.f32 %v2027, 1.0
        %v2071 = vadd.f32 %v2029, 1.0
        %v2072 = vadd.f32 %v2031, 1.0
        %v2073 = vadd.f32 %v2033, 1.0
        %v2074 = vadd.f32 %v2035, 1.0
        %v2075 = vadd.f32 %v2037, 1.0
        %v2076 = vadd.f32 %v2039, 1.0
        %v2077 = vadd.f32 %v2041, 1.0
        %v2078 = vadd.f32 %v2043, 1.0
        %v2079 = vadd.f32 %v2045, 1.0
        %v2080 = vadd.f32 %v2047, 1.0
        %v2081 = vadd.f32 %v2049, 1.0
        %v2082 = vrcp.pop %v2050
        %v2083 = vmul.f32 1.0, %v2082
        %v2084 = vrcp.pop %v2051
        %v2085 = vmul.f32 1.0, %v2084
        %v2086 = vrcp.pop %v2052
        %v2087 = vmul.f32 1.0, %v2086
        %v2088 = vrcp.pop %v2053
        %v2089 = vmul.f32 1.0, %v2088
        %v2090 = vrcp.pop %v2054
        %v2091 = vmul.f32 1.0, %v2090
        %v2092 = vrcp.pop %v2055
        %v2093 = vmul.f32 1.0, %v2092
        %v2094 = vrcp.pop %v2056
        %v2095 = vmul.f32 1.0, %v2094
        %v2096 = vrcp.pop %v2057
        %v2097 = vmul.f32 1.0, %v2096
        %v2098 = vrcp.pop %v2058
        %v2099 = vmul.f32 1.0, %v2098
        %v2100 = vrcp.pop %v2059
        %v2101 = vmul.f32 1.0, %v2100
        %v2102 = vrcp.pop %v2060
        %v2103 = vmul.f32 1.0, %v2102
        %v2104 = vrcp.pop %v2061
        %v2105 = vmul.f32 1.0, %v2104
        %v2106 = vrcp.pop %v2062
        %v2107 = vmul.f32 1.0, %v2106
        %v2108 = vrcp.pop %v2063
        %v2109 = vmul.f32 1.0, %v2108
        %v2110 = vrcp.pop %v2064
        %v2111 = vmul.f32 1.0, %v2110
        %v2112 = vrcp.pop %v2065
        %v2113 = vmul.f32 1.0, %v2112
        %v2114 = vrcp.pop %v2066
        %v2115 = vmul.f32 1.0, %v2114
        %v2116 = vrcp.pop %v2067
        %v2117 = vmul.f32 1.0, %v2116
        %v2118 = vrcp.pop %v2068
        %v2119 = vmul.f32 1.0, %v2118
        %v2120 = vrcp.pop %v2069
        %v2121 = vmul.f32 1.0, %v2120
        %v2122 = vrcp.pop %v2070
        %v2123 = vmul.f32 1.0, %v2122
        %v2124 = vrcp.pop %v2071
        %v2125 = vmul.f32 1.0, %v2124
        %v2126 = vrcp.pop %v2072
        %v2127 = vmul.f32 1.0, %v2126
        %v2128 = vrcp.pop %v2073
        %v2129 = vmul.f32 1.0, %v2128
        %v2130 = vrcp.pop %v2074
        %v2131 = vmul.f32 1.0, %v2130
        %v2132 = vrcp.pop %v2075
        %v2133 = vmul.f32 1.0, %v2132
        %v2134 = vrcp.pop %v2076
        %v2135 = vmul.f32 1.0, %v2134
        %v2136 = vrcp.pop %v2077
        %v2137 = vmul.f32 1.0, %v2136
        %v2138 = vrcp.pop %v2078
        %v2139 = vmul.f32 1.0, %v2138
        %v2140 = vrcp.pop %v2079
        %v2141 = vmul.f32 1.0, %v2140
        %v2142 = vrcp.pop %v2080
        %v2143 = vmul.f32 1.0, %v2142
        %v2144 = vrcp.pop %v2081
        %v2145 = vmul.f32 1.0, %v2144
        %v2146 = vmul.f32 %v1922, %v2083
        %v2147 = vmul.f32 %v1923, %v2085
        %v2148 = vmul.f32 %v1924, %v2087
        %v2149 = vmul.f32 %v1925, %v2089
        %v2150 = vmul.f32 %v1926, %v2091
        %v2151 = vmul.f32 %v1927, %v2093
        %v2152 = vmul.f32 %v1928, %v2095
        %v2153 = vmul.f32 %v1929, %v2097
        %v2154 = vmul.f32 %v1930, %v2099
        %v2155 = vmul.f32 %v1931, %v2101
        %v2156 = vmul.f32 %v1932, %v2103
        %v2157 = vmul.f32 %v1933, %v2105
        %v2158 = vmul.f32 %v1934, %v2107
        %v2159 = vmul.f32 %v1935, %v2109
        %v2160 = vmul.f32 %v1936, %v2111
        %v2161 = vmul.f32 %v1937, %v2113
        %v2162 = vmul.f32 %v1938, %v2115
        %v2163 = vmul.f32 %v1939, %v2117
        %v2164 = vmul.f32 %v1940, %v2119
        %v2165 = vmul.f32 %v1941, %v2121
        %v2166 = vmul.f32 %v1942, %v2123
        %v2167 = vmul.f32 %v1943, %v2125
        %v2168 = vmul.f32 %v1944, %v2127
        %v2169 = vmul.f32 %v1945, %v2129
        %v2170 = vmul.f32 %v1946, %v2131
        %v2171 = vmul.f32 %v1947, %v2133
        %v2172 = vmul.f32 %v1948, %v2135
        %v2173 = vmul.f32 %v1949, %v2137
        %v2174 = vmul.f32 %v1950, %v2139
        %v2175 = vmul.f32 %v1951, %v2141
        %v2176 = vmul.f32 %v1952, %v2143
        %v2177 = vmul.f32 %v1953, %v2145
        %v2178 = vld [vmem:[%s583] sm:$0xf]
        %v2179 = vld [vmem:[%s583 + $0x4] sm:$0xf]
        %v2180 = vld [vmem:[%s583 + $0x8] sm:$0xf]
        %v2181 = vld [vmem:[%s583 + $0xc] sm:$0xf]
        %v2182 = vld [vmem:[%s583 + $0x10] sm:$0xf]
        %v2183 = vld [vmem:[%s583 + $0x14] sm:$0xf]
        %v2184 = vld [vmem:[%s583 + $0x18] sm:$0xf]
        %v2185 = vld [vmem:[%s583 + $0x1c] sm:$0xf]
        %v2186 = vld [vmem:[%s583 + $0x20] sm:$0xf]
        %v2187 = vld [vmem:[%s583 + $0x24] sm:$0xf]
        %v2188 = vld [vmem:[%s583 + $0x28] sm:$0xf]
        %v2189 = vld [vmem:[%s583 + $0x2c] sm:$0xf]
        %v2190 = vld [vmem:[%s583 + $0x30] sm:$0xf]
        %v2191 = vld [vmem:[%s583 + $0x34] sm:$0xf]
        %v2192 = vld [vmem:[%s583 + $0x38] sm:$0xf]
        %v2193 = vld [vmem:[%s583 + $0x3c] sm:$0xf]
        %v2194 = vld [vmem:[%s583 + $0x40] sm:$0xf]
        %v2195 = vld [vmem:[%s583 + $0x44] sm:$0xf]
        %v2196 = vld [vmem:[%s583 + $0x48] sm:$0xf]
        %v2197 = vld [vmem:[%s583 + $0x4c] sm:$0xf]
        %v2198 = vld [vmem:[%s583 + $0x50] sm:$0xf]
        %v2199 = vld [vmem:[%s583 + $0x54] sm:$0xf]
        %v2200 = vld [vmem:[%s583 + $0x58] sm:$0xf]
        %v2201 = vld [vmem:[%s583 + $0x5c] sm:$0xf]
        %v2202 = vld [vmem:[%s583 + $0x60] sm:$0xf]
        %v2203 = vld [vmem:[%s583 + $0x64] sm:$0xf]
        %v2204 = vld [vmem:[%s583 + $0x68] sm:$0xf]
        %v2205 = vld [vmem:[%s583 + $0x6c] sm:$0xf]
        %v2206 = vld [vmem:[%s583 + $0x70] sm:$0xf]
        %v2207 = vld [vmem:[%s583 + $0x74] sm:$0xf]
        %v2208 = vld [vmem:[%s583 + $0x78] sm:$0xf]
        %v2209 = vld [vmem:[%s583 + $0x7c] sm:$0xf]
        %v2210 = vld [vmem:[#allocation3] sm:$0xff]
        %v2211 = vld [vmem:[#allocation3 + $0x8] sm:$0xff]
        %v2212 = vunpack.c.l.bf16 %v2178
        %v2213 = vunpack.c.l.bf16 %v2179
        %v2214 = vunpack.c.l.bf16 %v2180
        %v2215 = vunpack.c.l.bf16 %v2181
        %v2216 = vunpack.c.l.bf16 %v2182
        %v2217 = vunpack.c.l.bf16 %v2183
        %v2218 = vunpack.c.l.bf16 %v2184
        %v2219 = vunpack.c.l.bf16 %v2185
        %v2220 = vunpack.c.l.bf16 %v2186
        %v2221 = vunpack.c.l.bf16 %v2187
        %v2222 = vunpack.c.l.bf16 %v2188
        %v2223 = vunpack.c.l.bf16 %v2189
        %v2224 = vunpack.c.l.bf16 %v2190
        %v2225 = vunpack.c.l.bf16 %v2191
        %v2226 = vunpack.c.l.bf16 %v2192
        %v2227 = vunpack.c.l.bf16 %v2193
        %v2228 = vunpack.c.l.bf16 %v2194
        %v2229 = vunpack.c.l.bf16 %v2195
        %v2230 = vunpack.c.l.bf16 %v2196
        %v2231 = vunpack.c.l.bf16 %v2197
        %v2232 = vunpack.c.l.bf16 %v2198
        %v2233 = vunpack.c.l.bf16 %v2199
        %v2234 = vunpack.c.l.bf16 %v2200
        %v2235 = vunpack.c.l.bf16 %v2201
        %v2236 = vunpack.c.l.bf16 %v2202
        %v2237 = vunpack.c.l.bf16 %v2203
        %v2238 = vunpack.c.l.bf16 %v2204
        %v2239 = vunpack.c.l.bf16 %v2205
        %v2240 = vunpack.c.l.bf16 %v2206
        %v2241 = vunpack.c.l.bf16 %v2207
        %v2242 = vunpack.c.l.bf16 %v2208
        %v2243 = vunpack.c.l.bf16 %v2209
        %2245 = vset.pattern.permute.xlu0 0
        %2246 = vperm.xlu0 %2245, %v2212
        %v2247 = vpop.permute.xlu0 %2246
        %2250 = vset.pattern.permute.xlu0 0
        %2251 = vperm.xlu0 %2250, %v2213
        %v2252 = vpop.permute.xlu0 %2251
        %2255 = vset.pattern.permute.xlu0 0
        %2256 = vperm.xlu0 %2255, %v2214
        %v2257 = vpop.permute.xlu0 %2256
        %2260 = vset.pattern.permute.xlu0 0
        %2261 = vperm.xlu0 %2260, %v2215
        %v2262 = vpop.permute.xlu0 %2261
        %2265 = vset.pattern.permute.xlu0 0
        %2266 = vperm.xlu0 %2265, %v2216
        %v2267 = vpop.permute.xlu0 %2266
        %2270 = vset.pattern.permute.xlu0 0
        %2271 = vperm.xlu0 %2270, %v2217
        %v2272 = vpop.permute.xlu0 %2271
        %2275 = vset.pattern.permute.xlu0 0
        %2276 = vperm.xlu0 %2275, %v2218
        %v2277 = vpop.permute.xlu0 %2276
        %2280 = vset.pattern.permute.xlu0 0
        %2281 = vperm.xlu0 %2280, %v2219
        %v2282 = vpop.permute.xlu0 %2281
        %2285 = vset.pattern.permute.xlu0 0
        %2286 = vperm.xlu0 %2285, %v2220
        %v2287 = vpop.permute.xlu0 %2286
        %2290 = vset.pattern.permute.xlu0 0
        %2291 = vperm.xlu0 %2290, %v2221
        %v2292 = vpop.permute.xlu0 %2291
        %2295 = vset.pattern.permute.xlu0 0
        %2296 = vperm.xlu0 %2295, %v2222
        %v2297 = vpop.permute.xlu0 %2296
        %2300 = vset.pattern.permute.xlu0 0
        %2301 = vperm.xlu0 %2300, %v2223
        %v2302 = vpop.permute.xlu0 %2301
        %2305 = vset.pattern.permute.xlu0 0
        %2306 = vperm.xlu0 %2305, %v2224
        %v2307 = vpop.permute.xlu0 %2306
        %2310 = vset.pattern.permute.xlu0 0
        %2311 = vperm.xlu0 %2310, %v2225
        %v2312 = vpop.permute.xlu0 %2311
        %2315 = vset.pattern.permute.xlu0 0
        %2316 = vperm.xlu0 %2315, %v2226
        %v2317 = vpop.permute.xlu0 %2316
        %2320 = vset.pattern.permute.xlu0 0
        %2321 = vperm.xlu0 %2320, %v2227
        %v2322 = vpop.permute.xlu0 %2321
        %2325 = vset.pattern.permute.xlu0 0
        %2326 = vperm.xlu0 %2325, %v2228
        %v2327 = vpop.permute.xlu0 %2326
        %2330 = vset.pattern.permute.xlu0 0
        %2331 = vperm.xlu0 %2330, %v2229
        %v2332 = vpop.permute.xlu0 %2331
        %2335 = vset.pattern.permute.xlu0 0
        %2336 = vperm.xlu0 %2335, %v2230
        %v2337 = vpop.permute.xlu0 %2336
        %2340 = vset.pattern.permute.xlu0 0
        %2341 = vperm.xlu0 %2340, %v2231
        %v2342 = vpop.permute.xlu0 %2341
        %2345 = vset.pattern.permute.xlu0 0
        %2346 = vperm.xlu0 %2345, %v2232
        %v2347 = vpop.permute.xlu0 %2346
        %2350 = vset.pattern.permute.xlu0 0
        %2351 = vperm.xlu0 %2350, %v2233
        %v2352 = vpop.permute.xlu0 %2351
        %2355 = vset.pattern.permute.xlu0 0
        %2356 = vperm.xlu0 %2355, %v2234
        %v2357 = vpop.permute.xlu0 %2356
        %2360 = vset.pattern.permute.xlu0 0
        %2361 = vperm.xlu0 %2360, %v2235
        %v2362 = vpop.permute.xlu0 %2361
        %2365 = vset.pattern.permute.xlu0 0
        %2366 = vperm.xlu0 %2365, %v2236
        %v2367 = vpop.permute.xlu0 %2366
        %2370 = vset.pattern.permute.xlu0 0
        %2371 = vperm.xlu0 %2370, %v2237
        %v2372 = vpop.permute.xlu0 %2371
        %2375 = vset.pattern.permute.xlu0 0
        %2376 = vperm.xlu0 %2375, %v2238
        %v2377 = vpop.permute.xlu0 %2376
        %2380 = vset.pattern.permute.xlu0 0
        %2381 = vperm.xlu0 %2380, %v2239
        %v2382 = vpop.permute.xlu0 %2381
        %2385 = vset.pattern.permute.xlu0 0
        %2386 = vperm.xlu0 %2385, %v2240
        %v2387 = vpop.permute.xlu0 %2386
        %2390 = vset.pattern.permute.xlu0 0
        %2391 = vperm.xlu0 %2390, %v2241
        %v2392 = vpop.permute.xlu0 %2391
        %2395 = vset.pattern.permute.xlu0 0
        %2396 = vperm.xlu0 %2395, %v2242
        %v2397 = vpop.permute.xlu0 %2396
        %2400 = vset.pattern.permute.xlu0 0
        %2401 = vperm.xlu0 %2400, %v2243
        %v2402 = vpop.permute.xlu0 %2401
        %v2404 = vmul.f32 %v2146, %v2247
        %v2405 = vmul.f32 %v2147, %v2252
        %v2406 = vmul.f32 %v2148, %v2257
        %v2407 = vmul.f32 %v2149, %v2262
        %v2408 = vmul.f32 %v2150, %v2267
        %v2409 = vmul.f32 %v2151, %v2272
        %v2410 = vmul.f32 %v2152, %v2277
        %v2411 = vmul.f32 %v2153, %v2282
        %v2412 = vmul.f32 %v2154, %v2287
        %v2413 = vmul.f32 %v2155, %v2292
        %v2414 = vmul.f32 %v2156, %v2297
        %v2415 = vmul.f32 %v2157, %v2302
        %v2416 = vmul.f32 %v2158, %v2307
        %v2417 = vmul.f32 %v2159, %v2312
        %v2418 = vmul.f32 %v2160, %v2317
        %v2419 = vmul.f32 %v2161, %v2322
        %v2420 = vmul.f32 %v2162, %v2327
        %v2421 = vmul.f32 %v2163, %v2332
        %v2422 = vmul.f32 %v2164, %v2337
        %v2423 = vmul.f32 %v2165, %v2342
        %v2424 = vmul.f32 %v2166, %v2347
        %v2425 = vmul.f32 %v2167, %v2352
        %v2426 = vmul.f32 %v2168, %v2357
        %v2427 = vmul.f32 %v2169, %v2362
        %v2428 = vmul.f32 %v2170, %v2367
        %v2429 = vmul.f32 %v2171, %v2372
        %v2430 = vmul.f32 %v2172, %v2377
        %v2431 = vmul.f32 %v2173, %v2382
        %v2432 = vmul.f32 %v2174, %v2387
        %v2433 = vmul.f32 %v2175, %v2392
        %v2434 = vmul.f32 %v2176, %v2397
        %v2435 = vmul.f32 %v2177, %v2402
        %vm2436 = vcmask 130048
        %v2437 = vsel %vm2436, %v2404, 0.0
        %v2438 = vsel %vm2436, %v2406, 0.0
        %v2439 = vadd.f32 %v2437, %v2438
        %v2440 = vsel %vm2436, %v2408, 0.0
        %v2441 = vadd.f32 %v2439, %v2440
        %v2442 = vsel %vm2436, %v2410, 0.0
        %v2443 = vadd.f32 %v2441, %v2442
        %v2444 = vsel %vm2436, %v2412, 0.0
        %v2445 = vadd.f32 %v2443, %v2444
        %v2446 = vsel %vm2436, %v2414, 0.0
        %v2447 = vadd.f32 %v2445, %v2446
        %v2448 = vsel %vm2436, %v2416, 0.0
        %v2449 = vadd.f32 %v2447, %v2448
        %v2450 = vsel %vm2436, %v2418, 0.0
        %v2451 = vadd.f32 %v2449, %v2450
        %v2452 = vsel %vm2436, %v2420, 0.0
        %v2453 = vadd.f32 %v2451, %v2452
        %v2454 = vsel %vm2436, %v2422, 0.0
        %v2455 = vadd.f32 %v2453, %v2454
        %v2456 = vsel %vm2436, %v2424, 0.0
        %v2457 = vadd.f32 %v2455, %v2456
        %v2458 = vsel %vm2436, %v2426, 0.0
        %v2459 = vadd.f32 %v2457, %v2458
        %v2460 = vsel %vm2436, %v2428, 0.0
        %v2461 = vadd.f32 %v2459, %v2460
        %v2462 = vsel %vm2436, %v2430, 0.0
        %v2463 = vadd.f32 %v2461, %v2462
        %v2464 = vsel %vm2436, %v2432, 0.0
        %v2465 = vadd.f32 %v2463, %v2464
        %v2466 = vsel %vm2436, %v2434, 0.0
        %v2467 = vadd.f32 %v2465, %v2466
        %v2468 = vsel %vm2436, %v2405, 0.0
        %v2469 = vsel %vm2436, %v2407, 0.0
        %v2470 = vadd.f32 %v2468, %v2469
        %v2471 = vsel %vm2436, %v2409, 0.0
        %v2472 = vadd.f32 %v2470, %v2471
        %v2473 = vsel %vm2436, %v2411, 0.0
        %v2474 = vadd.f32 %v2472, %v2473
        %v2475 = vsel %vm2436, %v2413, 0.0
        %v2476 = vadd.f32 %v2474, %v2475
        %v2477 = vsel %vm2436, %v2415, 0.0
        %v2478 = vadd.f32 %v2476, %v2477
        %v2479 = vsel %vm2436, %v2417, 0.0
        %v2480 = vadd.f32 %v2478, %v2479
        %v2481 = vsel %vm2436, %v2419, 0.0
        %v2482 = vadd.f32 %v2480, %v2481
        %v2483 = vsel %vm2436, %v2421, 0.0
        %v2484 = vadd.f32 %v2482, %v2483
        %v2485 = vsel %vm2436, %v2423, 0.0
        %v2486 = vadd.f32 %v2484, %v2485
        %v2487 = vsel %vm2436, %v2425, 0.0
        %v2488 = vadd.f32 %v2486, %v2487
        %v2489 = vsel %vm2436, %v2427, 0.0
        %v2490 = vadd.f32 %v2488, %v2489
        %v2491 = vsel %vm2436, %v2429, 0.0
        %v2492 = vadd.f32 %v2490, %v2491
        %v2493 = vsel %vm2436, %v2431, 0.0
        %v2494 = vadd.f32 %v2492, %v2493
        %v2495 = vsel %vm2436, %v2433, 0.0
        %v2496 = vadd.f32 %v2494, %v2495
        %v2497 = vsel %vm2436, %v2435, 0.0
        %v2498 = vadd.f32 %v2496, %v2497
        %v2499 = vadd.f32 %v2210, %v2467
        %v2500 = vadd.f32 %v2211, %v2498
        %2501 = vst.msk [vmem:[#allocation3] sm:$0xff] %vm2436, %v2499
        %2502 = vst.msk [vmem:[#allocation3 + $0x8] sm:$0xff] %vm2436, %v2500
        // Predicated region
        $region77: #{tpu_custom_call.1} parent=71 // pred_check
          %p2503 = pneg %p588
        $region78: #{tpu_custom_call.1} parent=71 // pred_check_branch
          %2505 = sbr.rel (%p2503) target = $region80
        $region79: #{tpu_custom_call.1} parent=71 // pred_region
          %v2506 = vld [vmem:[%s552] sm:$0xff]
          %v2507 = vld [vmem:[%s552 + $0x8] sm:$0xff]
          %v2508 = vld [vmem:[%s8] sm:$0xff]
          %v2509 = vld [vmem:[%s8 + $0x8] sm:$0xff]
          %v2510 = vld [vmem:[%s8 + $0x10] sm:$0xff]
          %v2511 = vld [vmem:[%s8 + $0x18] sm:$0xff]
          %v2512 = vld [vmem:[#allocation3] sm:$0xff]
          %v2513 = vld [vmem:[#allocation3 + $0x8] sm:$0xff]
          %v2514 = vld [vmem:[%s9] sm:$0xff]
          %v2515 = vld [vmem:[%s9 + $0x8] sm:$0xff]
          %v2517 = vsel %vm2436, %v2512, 0
          %v2520 = vsel %vm2436, %v2513, 0
          %2522 = vmatprep.subr.mxu0 0.0
          %2523 = vmatpush1.msra.mxu0 0.0
          %2524 = vmatprep.subr.mxu0 0.0
          %2525 = vmatpush1.msra.mxu0 0.0
          %2526 = vmatprep.subr.mxu0 0.0
          %2527 = vmatpush1.msra.mxu0 0.0
          %2528 = vmatprep.subr.mxu0 0.0
          %2529 = vmatpush1.msra.mxu0 0.0
          %2530 = vmatprep.subr.mxu0 0.0
          %2531 = vmatpush1.msra.mxu0 0.0
          %2532 = vmatprep.subr.mxu0 0.0
          %2533 = vmatpush1.msra.mxu0 0.0
          %2534 = vmatprep.subr.mxu0 0.0
          %2535 = vmatpush1.msra.mxu0 0.0
          %2536 = vmatprep.subr.mxu0 0.0
          %2537 = vmatpush1.msra.mxu0 0.0
          %2538 = vmatprep.subr.mxu0 0.0
          %2539 = vmatpush1.msra.mxu0 0.0
          %2540 = vmatprep.subr.mxu0 0.0
          %2541 = vmatpush1.msra.mxu0 0.0
          %2542 = vmatprep.subr.mxu0 0.0
          %2543 = vmatpush1.msra.mxu0 0.0
          %2544 = vmatprep.subr.mxu0 0.0
          %2545 = vmatpush1.msra.mxu0 0.0
          %2546 = vmatprep.subr.mxu0 0.0
          %2547 = vmatpush1.msra.mxu0 0.0
          %2548 = vmatprep.subr.mxu0 0.0
          %2549 = vmatpush1.msra.mxu0 0.0
          %2550 = vmatprep.subr.mxu0 0.0
          %2551 = vmatpush1.msra.mxu0 %v2515
          %2552 = vmatprep.subr.mxu0 0.0
          %2553 = vmatpush1.msra.mxu0 %v2514
          %2554 = vmatprep.subr.mxu0 0.0
          %2555 = vmatpush2.msra.mxu0 0.0
          %2556 = vmatprep.subr.mxu0 0.0
          %2557 = vmatpush2.msra.mxu0 0.0
          %2558 = vmatprep.subr.mxu0 0.0
          %2559 = vmatpush2.msra.mxu0 0.0
          %2560 = vmatprep.subr.mxu0 0.0
          %2561 = vmatpush2.msra.mxu0 0.0
          %2562 = vmatprep.subr.mxu0 0.0
          %2563 = vmatpush2.msra.mxu0 0.0
          %2564 = vmatprep.subr.mxu0 0.0
          %2565 = vmatpush2.msra.mxu0 0.0
          %2566 = vmatprep.subr.mxu0 0.0
          %2567 = vmatpush2.msra.mxu0 0.0
          %2568 = vmatprep.subr.mxu0 0.0
          %2569 = vmatpush2.msra.mxu0 0.0
          %2570 = vmatprep.subr.mxu0 0.0
          %2571 = vmatpush2.msra.mxu0 0.0
          %2572 = vmatprep.subr.mxu0 0.0
          %2573 = vmatpush2.msra.mxu0 0.0
          %2574 = vmatprep.subr.mxu0 0.0
          %2575 = vmatpush2.msra.mxu0 0.0
          %2576 = vmatprep.subr.mxu0 0.0
          %2577 = vmatpush2.msra.mxu0 0.0
          %2578 = vmatprep.subr.mxu0 0.0
          %2579 = vmatpush2.msra.mxu0 0.0
          %2580 = vmatprep.subr.mxu0 0.0
          %2581 = vmatpush2.msra.mxu0 0.0
          %2582 = vmatprep.subr.mxu0 0.0
          %2583 = vmatpush2.msra.mxu0 0.0
          %2584 = vmatprep.subr.mxu0 0.0
          %2585 = vmatpush2.msra.mxu0 0.0
          %2586 = vmatprep.mubr.f32.mxu0 0.0
          %2587 = vmatmul.mubr.f32.gmra.mxu0 %v2517
          %v2588 = vpop.f32.mrf.mxu0
          %v2589 = vadd.f32 0.0, %v2588
          %v2590 = vpop.f32.mrf.mxu0
          %2591 = vmatprep.mubr.f32.mxu0 0.0
          %2592 = vmatmul.mubr.f32.gmra.mxu0 %v2520
          %v2593 = vpop.f32.mrf.mxu0
          %v2594 = vadd.f32 0.0, %v2593
          %v2595 = vpop.f32.mrf.mxu0
          %2596 = vdwg.mxu0
          %vm2597 = vcmask 261120
          %v2599 = vsel %vm2597, %v2506, 0
          %v2602 = vsel %vm2597, %v2507, 0
          %2604 = vmatprep.subr.mxu0 0.0
          %2605 = vmatpush1.msra.mxu0 0.0
          %2606 = vmatprep.subr.mxu0 0.0
          %2607 = vmatpush1.msra.mxu0 0.0
          %2608 = vmatprep.subr.mxu0 0.0
          %2609 = vmatpush1.msra.mxu0 0.0
          %2610 = vmatprep.subr.mxu0 0.0
          %2611 = vmatpush1.msra.mxu0 0.0
          %2612 = vmatprep.subr.mxu0 0.0
          %2613 = vmatpush1.msra.mxu0 0.0
          %2614 = vmatprep.subr.mxu0 0.0
          %2615 = vmatpush1.msra.mxu0 0.0
          %2616 = vmatprep.subr.mxu0 0.0
          %2617 = vmatpush1.msra.mxu0 0.0
          %2618 = vmatprep.subr.mxu0 0.0
          %2619 = vmatpush1.msra.mxu0 0.0
          %2620 = vmatprep.subr.mxu0 0.0
          %2621 = vmatpush1.msra.mxu0 0.0
          %2622 = vmatprep.subr.mxu0 0.0
          %2623 = vmatpush1.msra.mxu0 0.0
          %2624 = vmatprep.subr.mxu0 0.0
          %2625 = vmatpush1.msra.mxu0 0.0
          %2626 = vmatprep.subr.mxu0 0.0
          %2627 = vmatpush1.msra.mxu0 0.0
          %2628 = vmatprep.subr.mxu0 0.0
          %2629 = vmatpush1.msra.mxu0 %v2511
          %2630 = vmatprep.subr.mxu0 0.0
          %2631 = vmatpush1.msra.mxu0 %v2510
          %2632 = vmatprep.subr.mxu0 0.0
          %2633 = vmatpush1.msra.mxu0 %v2509
          %2634 = vmatprep.subr.mxu0 0.0
          %2635 = vmatpush1.msra.mxu0 %v2508
          %2636 = vmatprep.subr.mxu0 0.0
          %2637 = vmatpush2.msra.mxu0 0.0
          %2638 = vmatprep.subr.mxu0 0.0
          %2639 = vmatpush2.msra.mxu0 0.0
          %2640 = vmatprep.subr.mxu0 0.0
          %2641 = vmatpush2.msra.mxu0 0.0
          %2642 = vmatprep.subr.mxu0 0.0
          %2643 = vmatpush2.msra.mxu0 0.0
          %2644 = vmatprep.subr.mxu0 0.0
          %2645 = vmatpush2.msra.mxu0 0.0
          %2646 = vmatprep.subr.mxu0 0.0
          %2647 = vmatpush2.msra.mxu0 0.0
          %2648 = vmatprep.subr.mxu0 0.0
          %2649 = vmatpush2.msra.mxu0 0.0
          %2650 = vmatprep.subr.mxu0 0.0
          %2651 = vmatpush2.msra.mxu0 0.0
          %2652 = vmatprep.subr.mxu0 0.0
          %2653 = vmatpush2.msra.mxu0 0.0
          %2654 = vmatprep.subr.mxu0 0.0
          %2655 = vmatpush2.msra.mxu0 0.0
          %2656 = vmatprep.subr.mxu0 0.0
          %2657 = vmatpush2.msra.mxu0 0.0
          %2658 = vmatprep.subr.mxu0 0.0
          %2659 = vmatpush2.msra.mxu0 0.0
          %2660 = vmatprep.subr.mxu0 0.0
          %2661 = vmatpush2.msra.mxu0 0.0
          %2662 = vmatprep.subr.mxu0 0.0
          %2663 = vmatpush2.msra.mxu0 0.0
          %2664 = vmatprep.subr.mxu0 0.0
          %2665 = vmatpush2.msra.mxu0 0.0
          %2666 = vmatprep.subr.mxu0 0.0
          %2667 = vmatpush2.msra.mxu0 0.0
          %2668 = vmatprep.mubr.f32.mxu0 0.0
          %2669 = vmatmul.mubr.f32.gmra.mxu0 %v2599
          %v2670 = vpop.f32.mrf.mxu0
          %v2671 = vadd.f32 %v2589, %v2670
          %v2672 = vpop.f32.mrf.mxu0
          %2673 = vmatprep.mubr.f32.mxu0 0.0
          %2674 = vmatmul.mubr.f32.gmra.mxu0 %v2602
          %v2675 = vpop.f32.mrf.mxu0
          %v2676 = vadd.f32 %v2594, %v2675
          %v2677 = vpop.f32.mrf.mxu0
          %2678 = vdwg.mxu0
          %v2679 = vld [vmem:[%s10] sm:$0x1]
          %v2681 = vlaneseq
          %v2682 = vshrl.u32 %v2681, 7
          %v2683 = vsub.s32 0, %v2682
          %v2684 = vrot.slane %v2679, %v2683
          %v2686 = vadd.f32 %v2671, %v2684
          %v2687 = vadd.f32 %v2676, %v2684
          %v2688 = vxor.u32 %v2686, 2147483648
          %v2689 = vxor.u32 %v2687, 2147483648
          %v2690 = vmul.f32 %v2688, 1.442695
          %v2691 = vpow.pop %v2690
          %v2692 = vmul.f32 %v2689, 1.442695
          %v2693 = vpow.pop %v2692
          %v2694 = vadd.f32 %v2691, 1.0
          %v2695 = vadd.f32 %v2693, 1.0
          %v2696 = vrcp.pop %v2694
          %v2697 = vmul.f32 1.0, %v2696
          %v2698 = vrcp.pop %v2695
          %v2699 = vmul.f32 1.0, %v2698
          %v2700 = vmul.f32 %v2686, %v2697
          %v2701 = vmul.f32 %v2687, %v2699
          %v2702 = vld [vmem:[%s11] sm:$0xff]
          %v2703 = vld [vmem:[%s11 + $0x8] sm:$0xff]
          %v2704 = vld [vmem:[%s11 + $0x10] sm:$0xff]
          %v2705 = vld [vmem:[%s11 + $0x18] sm:$0xff]
          %v2706 = vld [vmem:[%s11 + $0x20] sm:$0xff]
          %v2707 = vld [vmem:[%s11 + $0x28] sm:$0xff]
          %v2708 = vld [vmem:[%s11 + $0x30] sm:$0xff]
          %v2709 = vld [vmem:[%s11 + $0x38] sm:$0xff]
          %v2710 = vld [vmem:[%s12] sm:$0x1]
          %v2712 = vlaneseq
          %v2713 = vshrl.u32 %v2712, 7
          %v2714 = vsub.s32 0, %v2713
          %v2715 = vrot.slane %v2710, %v2714
          %vm2717 = vcmask 523264
          %v2719 = vsel %vm2717, %v2700, 0
          %v2722 = vsel %vm2717, %v2701, 0
          %2724 = vmatprep.subr.mxu0 0.0
          %2725 = vmatpush1.msra.mxu0 0.0
          %2726 = vmatprep.subr.mxu0 0.0
          %2727 = vmatpush1.msra.mxu0 0.0
          %2728 = vmatprep.subr.mxu0 0.0
          %2729 = vmatpush1.msra.mxu0 0.0
          %2730 = vmatprep.subr.mxu0 0.0
          %2731 = vmatpush1.msra.mxu0 0.0
          %2732 = vmatprep.subr.mxu0 0.0
          %2733 = vmatpush1.msra.mxu0 0.0
          %2734 = vmatprep.subr.mxu0 0.0
          %2735 = vmatpush1.msra.mxu0 0.0
          %2736 = vmatprep.subr.mxu0 0.0
          %2737 = vmatpush1.msra.mxu0 0.0
          %2738 = vmatprep.subr.mxu0 0.0
          %2739 = vmatpush1.msra.mxu0 0.0
          %2740 = vmatprep.subr.mxu0 0.0
          %2741 = vmatpush1.msra.mxu0 %v2709
          %2742 = vmatprep.subr.mxu0 0.0
          %2743 = vmatpush1.msra.mxu0 %v2708
          %2744 = vmatprep.subr.mxu0 0.0
          %2745 = vmatpush1.msra.mxu0 %v2707
          %2746 = vmatprep.subr.mxu0 0.0
          %2747 = vmatpush1.msra.mxu0 %v2706
          %2748 = vmatprep.subr.mxu0 0.0
          %2749 = vmatpush1.msra.mxu0 %v2705
          %2750 = vmatprep.subr.mxu0 0.0
          %2751 = vmatpush1.msra.mxu0 %v2704
          %2752 = vmatprep.subr.mxu0 0.0
          %2753 = vmatpush1.msra.mxu0 %v2703
          %2754 = vmatprep.subr.mxu0 0.0
          %2755 = vmatpush1.msra.mxu0 %v2702
          %2756 = vmatprep.subr.mxu0 0.0
          %2757 = vmatpush2.msra.mxu0 0.0
          %2758 = vmatprep.subr.mxu0 0.0
          %2759 = vmatpush2.msra.mxu0 0.0
          %2760 = vmatprep.subr.mxu0 0.0
          %2761 = vmatpush2.msra.mxu0 0.0
          %2762 = vmatprep.subr.mxu0 0.0
          %2763 = vmatpush2.msra.mxu0 0.0
          %2764 = vmatprep.subr.mxu0 0.0
          %2765 = vmatpush2.msra.mxu0 0.0
          %2766 = vmatprep.subr.mxu0 0.0
          %2767 = vmatpush2.msra.mxu0 0.0
          %2768 = vmatprep.subr.mxu0 0.0
          %2769 = vmatpush2.msra.mxu0 0.0
          %2770 = vmatprep.subr.mxu0 0.0
          %2771 = vmatpush2.msra.mxu0 0.0
          %2772 = vmatprep.subr.mxu0 0.0
          %2773 = vmatpush2.msra.mxu0 0.0
          %2774 = vmatprep.subr.mxu0 0.0
          %2775 = vmatpush2.msra.mxu0 0.0
          %2776 = vmatprep.subr.mxu0 0.0
          %2777 = vmatpush2.msra.mxu0 0.0
          %2778 = vmatprep.subr.mxu0 0.0
          %2779 = vmatpush2.msra.mxu0 0.0
          %2780 = vmatprep.subr.mxu0 0.0
          %2781 = vmatpush2.msra.mxu0 0.0
          %2782 = vmatprep.subr.mxu0 0.0
          %2783 = vmatpush2.msra.mxu0 0.0
          %2784 = vmatprep.subr.mxu0 0.0
          %2785 = vmatpush2.msra.mxu0 0.0
          %2786 = vmatprep.subr.mxu0 0.0
          %2787 = vmatpush2.msra.mxu0 0.0
          %2788 = vmatprep.mubr.f32.mxu0 0.0
          %2789 = vmatmul.mubr.f32.gmra.mxu0 %v2719
          %v2790 = vpop.f32.mrf.mxu0
          %v2791 = vadd.f32 %v2715, %v2790
          %v2792 = vpop.f32.mrf.mxu0
          %2793 = vmatprep.mubr.f32.mxu0 0.0
          %2794 = vmatmul.mubr.f32.gmra.mxu0 %v2722
          %v2795 = vpop.f32.mrf.mxu0
          %v2796 = vadd.f32 %v2715, %v2795
          %v2797 = vpop.f32.mrf.mxu0
          %2798 = vdwg.mxu0
          %v2799 = vadd.f32 %v2791, %v2506
          %v2800 = vadd.f32 %v2796, %v2507
          %2801 = vst.msk [vmem:[%s543] sm:$0xff] %vm2597, %v2799
          %2802 = vst.msk [vmem:[%s543 + $0x8] sm:$0xff] %vm2597, %v2800
        $region80: #{tpu_custom_call.1} parent=71 // pred_fallthru
          _
        %s2803 = sand.u32 %s354, 1
        %s2804 = scalar_lea.sflag [#allocation5], %s2803
        %s2805 = sand.u32 %s354, 1
        %s2806 = smul.addr %s2805, 16
        %s2807 = scalar_lea.vmem [#allocation4], %s2806
        // Predicated region
        $region81: #{tpu_custom_call.1} parent=71 // pred_check
          %p2808 = pneg %p364
        $region82: #{tpu_custom_call.1} parent=71 // pred_check_branch
          %2810 = sbr.rel (%p2808) target = $region84
        $region83: #{tpu_custom_call.1} parent=71 // pred_region
          %s2811 = smul.u32 2, %s33
          %s2813 = ssub.s32 256, 256
          %2814 = vsyncadd %s2804, %s2813
          %s2815 = smul.addr %s32, 2
          %s2816 = sadd.s32 %s2811, %s2815
          %s2817 = smul.addr %s2816, 128
          %s2818 = scalar_lea.hbm %s13, %s2817
          %s2819 = sshll.u32 %s2807, 4
          %s2820 = int_to_ptr.vmem [resolvable:$true] %s2819
          %2825 = dma.vmem_to_hbm [thread:$0]  %s2820, 256, %s2818, %s2804, 128, 128, 8
        $region84: #{tpu_custom_call.1} parent=71 // pred_fallthru
          _
      $region72: #{tpu_custom_call.1} parent=5 // pred_fallthru
        _
      %p2826 = scmp.le.s32.totalorder 2, %s22
      // Predicated region
      $region85: #{tpu_custom_call.1} parent=5 // pred_check
        %p2827 = pneg %p2826
      $region86: #{tpu_custom_call.1} parent=5 // pred_check_branch
        %2829 = sbr.rel (%p2827) target = $region88
      $region87: #{tpu_custom_call.1} parent=5 // pred_region
        %s2830 = ssub.s32 %s22, 2
        // Predicated region
        $region89: #{tpu_custom_call.1} parent=87 // pred_check
          %p2831 = pneg %p370
        $region90: #{tpu_custom_call.1} parent=87 // pred_check_branch
          %2833 = sbr.rel (%p2831) target = $region92
        $region91: #{tpu_custom_call.1} parent=87 // pred_region
          %s2834 = sand.u32 %s355, 1
          %s2835 = scalar_lea.sflag [#allocation5], %s2834
          %s2836 = sand.u32 %s355, 1
          %s2837 = smul.addr %s2836, 16
          %s2838 = scalar_lea.vmem [#allocation4], %s2837
          %2839 = dma.done %s2835, 256
        $region92: #{tpu_custom_call.1} parent=87 // pred_fallthru
          _
      $region88: #{tpu_custom_call.1} parent=5 // pred_fallthru
        _
    $region6: #{tpu_custom_call.1} parent=1 // loop_footer
      %s26 = sadd.s32 1, %s22
    $region7: #{tpu_custom_call.1} parent=1 // loop_footer_branch
      %21 = sbr.rel target = $region3
    $region8: #{tpu_custom_call.1} parent=1 // loop_exit
      _
    %2840 = vsyncpa [#allocation5], 1
    %s2841 = scalar_lea.sflag [#allocation5], 1
    %2842 = vsyncpa %s2841, 1

</llo_original>
